<compile_context>
chip_gen: v5e
topology: v5e:2x2
jax: 0.10.0
libtpu: 0.0.40
codegen_flags: <defaults>
</compile_context>

<pallas_src>
import math

import jax
import jax.numpy as jnp
from jax.experimental import pallas as pl
from jax.experimental.pallas import tpu as pltpu  # noqa: F401  (TPU backend parity)

# ---- model hyperparameters (small, synthetic) -------------------------------
VOCAB = 64
NUM_LABELS = 3
NUM_LAYERS = 2
NUM_HEADS = 4
HIDDEN = 32
HEAD_DIM = HIDDEN // NUM_HEADS
FFN = 64
SEQ = 8
BATCH = 2

# Padded classifier output block: sublane-aligned rows, lane-dense columns.
LOGIT_ROWS = max(8, ((BATCH + 7) // 8) * 8)
LOGIT_COLS = 128

# ---- packed weight slab layout: ONE f32 [SLAB_ROWS, 128] buffer (single DMA) --
OFF_WQ = 0                         # [HIDDEN, HIDDEN]   (pre-scaled by 1/sqrt(HD))
OFF_WK = OFF_WQ + HIDDEN           # [HIDDEN, HIDDEN]
OFF_WV = OFF_WK + HIDDEN           # [HIDDEN, HIDDEN]
OFF_WO = OFF_WV + HIDDEN           # [HIDDEN, HIDDEN]
OFF_W1 = OFF_WO + HIDDEN           # [HIDDEN, FFN]
OFF_W2 = OFF_W1 + HIDDEN           # [FFN, HIDDEN]
OFF_VEC = OFF_W2 + FFN             # 10 single-row vectors
(V_BQ, V_BK, V_BV, V_BO, V_G1, V_BE1, V_B1, V_B2, V_G2, V_BE2) = range(10)
NUM_VECS = 10
LAYER_STRIDE = ((OFF_VEC + NUM_VECS + 7) // 8) * 8      # 240 rows / layer
OFF_WC = NUM_LAYERS * LAYER_STRIDE                      # [HIDDEN, 128] padded classifier
OFF_BC = OFF_WC + HIDDEN                                # [1, 128]
SLAB_ROWS = ((OFF_BC + 1 + 7) // 8) * 8                 # 520
SLAB_COLS = LOGIT_COLS                                  # 128


# ---- in-kernel helpers -------------------------------------------------------
def _layernorm(x, g, b, eps=1e-12):
    mu = jnp.mean(x, axis=-1, keepdims=True)
    var = jnp.mean((x - mu) ** 2, axis=-1, keepdims=True)
    return (x - mu) * jax.lax.rsqrt(var + eps) * g + b


def _gelu(x):
    # tanh approximation (EUP-friendly)
    return 0.5 * x * (1.0 + jnp.tanh(0.7978845608028654 * (x + 0.044715 * x * x * x)))


# ---- single fused forward kernel ---------------------------------------------
def fused_forward_kernel(h_ref, bias_ref, w_ref, logits_ref):
    """Whole forward (all encoder layers + CLS pooling + classifier) in one kernel.

    h_ref     : [B*S, H]            token+pos embeddings (f32)
    bias_ref  : [NH*B, 1, S]        additive attention bias, head-major batch order
    w_ref     : [SLAB_ROWS, 128]    all weights packed into one slab (single DMA)
    logits_ref: [LOGIT_ROWS, 128]   padded logits (real values in [:B, :NUM_LABELS])
    """
    def mat(row, nrows, ncols):
        return w_ref[row:row + nrows, :ncols]

    def vec(row, ncols):
        return w_ref[row:row + 1, :ncols]

    h = h_ref[...]                                           # [B*S, H], stays in VMEM
    # Hoisted: broadcast the additive key mask once for the batched score tensor.
    bias = jnp.broadcast_to(bias_ref[...], (NUM_HEADS * BATCH, SEQ, SEQ))

    def split_heads(t):
        # [B*S, H] -> [NH*B, S, HD]; head-major leading axis so every reshape is
        # a layout-preserving leading-dim split (sublane tile boundary = SEQ = 8).
        parts = [t[:, n * HEAD_DIM:(n + 1) * HEAD_DIM].reshape(BATCH, SEQ, HEAD_DIM)
                 for n in range(NUM_HEADS)]
        return jnp.concatenate(parts, axis=0)

    def merge_heads(t):
        # [NH*B, S, HD] -> [B*S, H]; leading slices/merges + one lane concat.
        parts = [t[n * BATCH:(n + 1) * BATCH].reshape(BATCH * SEQ, HEAD_DIM)
                 for n in range(NUM_HEADS)]
        return jnp.concatenate(parts, axis=-1)

    for l in range(NUM_LAYERS):                              # static unroll (L tiny)
        base = l * LAYER_STRIDE
        vrow = base + OFF_VEC

        # ---- QKV projections: whole batch, one [B*S,H]x[H,H] MXU push each.
        # Softmax scale is already folded into wq / bq (pack_params).
        q = jnp.dot(h, mat(base + OFF_WQ, HIDDEN, HIDDEN),
                    preferred_element_type=jnp.float32) + vec(vrow + V_BQ, HIDDEN)
        k = jnp.dot(h, mat(base + OFF_WK, HIDDEN, HIDDEN),
                    preferred_element_type=jnp.float32) + vec(vrow + V_BK, HIDDEN)
        v = jnp.dot(h, mat(base + OFF_WV, HIDDEN, HIDDEN),
                    preferred_element_type=jnp.float32) + vec(vrow + V_BV, HIDDEN)

        # ---- attention: ONE batched contraction over b = NH*B per step.
        qh, kh, vh = split_heads(q), split_heads(k), split_heads(v)
        s = jnp.einsum('bqd,bkd->bqk', qh, kh,
                       preferred_element_type=jnp.float32) + bias
        s_max = jnp.max(s, axis=-1, keepdims=True)
        e = jnp.exp(s - s_max)
        p = e * pl.reciprocal(jnp.sum(e, axis=-1, keepdims=True), approx=True)
        ctx = jnp.einsum('bqk,bkd->bqd', p, vh,
                         preferred_element_type=jnp.float32)  # [NH*B, S, HD]

        # ---- single output projection over the merged heads.
        attn = jnp.dot(merge_heads(ctx), mat(base + OFF_WO, HIDDEN, HIDDEN),
                       preferred_element_type=jnp.float32) + vec(vrow + V_BO, HIDDEN)
        h = _layernorm(h + attn, vec(vrow + V_G1, HIDDEN), vec(vrow + V_BE1, HIDDEN))

        # ---- FFN over the whole batch.
        ff = _gelu(jnp.dot(h, mat(base + OFF_W1, HIDDEN, FFN),
                           preferred_element_type=jnp.float32) + vec(vrow + V_B1, FFN))
        ff = jnp.dot(ff, mat(base + OFF_W2, FFN, HIDDEN),
                     preferred_element_type=jnp.float32) + vec(vrow + V_B2, HIDDEN)
        h = _layernorm(h + ff, vec(vrow + V_G2, HIDDEN), vec(vrow + V_BE2, HIDDEN))

    # ---- [CLS] pooling (single strided read) + classifier head.
    cls = h.reshape(BATCH, SEQ, HIDDEN)[:, 0, :]             # [B, H]
    if LOGIT_ROWS > BATCH:
        pooled = jnp.concatenate(
            [cls, jnp.zeros((LOGIT_ROWS - BATCH, HIDDEN), jnp.float32)], axis=0)
    else:
        pooled = cls
    logits_ref[...] = (jnp.dot(pooled, w_ref[OFF_WC:OFF_WC + HIDDEN, :],
                               preferred_element_type=jnp.float32)
                       + w_ref[OFF_BC:OFF_BC + 1, :])        # lane-dense [8,128] store


def fused_forward(h0, bias, wslab):
    """One gridless pallas_call for the whole encoder + classifier (3 inputs)."""
    logits_pad = pl.pallas_call(
        fused_forward_kernel,
        out_shape=jax.ShapeDtypeStruct((LOGIT_ROWS, LOGIT_COLS), jnp.float32),
    )(h0, bias, wslab)
    return logits_pad[:BATCH, :NUM_LABELS]


# ---- parameter init (deterministic, synthetic) -------------------------------
def init_params(key):
    def nrm(k, shape):
        return 0.02 * jax.random.normal(k, shape, jnp.float32)

    k_emb, k_pos, k_cls, k_layers = jax.random.split(key, 4)
    params = {
        "tok_emb": nrm(k_emb, (VOCAB, HIDDEN)),
        "pos_emb": nrm(k_pos, (SEQ, HIDDEN)),
        "wc": nrm(k_cls, (HIDDEN, NUM_LABELS)),
        "bc": jnp.zeros((1, NUM_LABELS), jnp.float32),
        "layers": [],
    }
    for lk in jax.random.split(k_layers, NUM_LAYERS):
        ks = jax.random.split(lk, 6)
        lp = {
            "wq": nrm(ks[0], (HIDDEN, HIDDEN)), "bq": jnp.zeros((1, HIDDEN), jnp.float32),
            "wk": nrm(ks[1], (HIDDEN, HIDDEN)), "bk": jnp.zeros((1, HIDDEN), jnp.float32),
            "wv": nrm(ks[2], (HIDDEN, HIDDEN)), "bv": jnp.zeros((1, HIDDEN), jnp.float32),
            "wo": nrm(ks[3], (HIDDEN, HIDDEN)), "bo": jnp.zeros((1, HIDDEN), jnp.float32),
            "g1": jnp.ones((1, HIDDEN), jnp.float32), "be1": jnp.zeros((1, HIDDEN), jnp.float32),
            "w1": nrm(ks[4], (HIDDEN, FFN)), "b1": jnp.zeros((1, FFN), jnp.float32),
            "w2": nrm(ks[5], (FFN, HIDDEN)), "b2": jnp.zeros((1, HIDDEN), jnp.float32),
            "g2": jnp.ones((1, HIDDEN), jnp.float32), "be2": jnp.zeros((1, HIDDEN), jnp.float32),
        }
        params["layers"].append(lp)
    return params


def pack_params(params):
    """Pack every weight / bias / LN vector and the (zero-padded) classifier head
    into ONE contiguous f32 [SLAB_ROWS, 128] slab -> single HBM->VMEM DMA.
    The softmax 1/sqrt(HEAD_DIM) scale is folded into wq / bq here."""
    scale = 1.0 / math.sqrt(HEAD_DIM)
    slab = jnp.zeros((SLAB_ROWS, SLAB_COLS), jnp.float32)
    for l, lp in enumerate(params["layers"]):
        base = l * LAYER_STRIDE
        vrow = base + OFF_VEC
        slab = slab.at[base + OFF_WQ: base + OFF_WQ + HIDDEN, :HIDDEN].set(lp["wq"] * scale)
        slab = slab.at[base + OFF_WK: base + OFF_WK + HIDDEN, :HIDDEN].set(lp["wk"])
        slab = slab.at[base + OFF_WV: base + OFF_WV + HIDDEN, :HIDDEN].set(lp["wv"])
        slab = slab.at[base + OFF_WO: base + OFF_WO + HIDDEN, :HIDDEN].set(lp["wo"])
        slab = slab.at[base + OFF_W1: base + OFF_W1 + HIDDEN, :FFN].set(lp["w1"])
        slab = slab.at[base + OFF_W2: base + OFF_W2 + FFN, :HIDDEN].set(lp["w2"])
        slab = slab.at[vrow + V_BQ, :HIDDEN].set(lp["bq"][0] * scale)
        slab = slab.at[vrow + V_BK, :HIDDEN].set(lp["bk"][0])
        slab = slab.at[vrow + V_BV, :HIDDEN].set(lp["bv"][0])
        slab = slab.at[vrow + V_BO, :HIDDEN].set(lp["bo"][0])
        slab = slab.at[vrow + V_G1, :HIDDEN].set(lp["g1"][0])
        slab = slab.at[vrow + V_BE1, :HIDDEN].set(lp["be1"][0])
        slab = slab.at[vrow + V_B1, :FFN].set(lp["b1"][0])
        slab = slab.at[vrow + V_B2, :HIDDEN].set(lp["b2"][0])
        slab = slab.at[vrow + V_G2, :HIDDEN].set(lp["g2"][0])
        slab = slab.at[vrow + V_BE2, :HIDDEN].set(lp["be2"][0])
    slab = slab.at[OFF_WC:OFF_WC + HIDDEN, :NUM_LABELS].set(params["wc"])
    slab = slab.at[OFF_BC, :NUM_LABELS].set(params["bc"][0])
    return slab


# ---- forward (mirrors AutoModelTE.forward) -----------------------------------
def forward(params, wslab, x, y=None):
    ids = x["input_ids"]                                     # [B, S] int32
    mask = x["attention_mask"].astype(jnp.float32)           # [B, S]
    B, S = ids.shape

    # embedding lookup (glue, plain JAX gather)
    h = params["tok_emb"][ids] + params["pos_emb"][:S][None]     # [B, S, H]
    h0 = h.reshape(B * S, HIDDEN)

    # Additive key-mask bias, pre-shaped host-side for the kernel's head-major
    # batched score tensor (ordering: leading index = head*B + batch).
    bias_b = (mask - 1.0) * 1e9                                  # [B, S]
    bias = jnp.broadcast_to(bias_b[None, :, None, :],
                            (NUM_HEADS, B, 1, S)).reshape(NUM_HEADS * B, 1, S)

    logits = fused_forward(h0, bias, wslab)                      # [B, num_labels]

    if y is not None:
        logp = jax.nn.log_softmax(logits, axis=-1)
        loss = -jnp.mean(jnp.take_along_axis(logp, y[:, None], axis=-1))
        return loss, logits
    return logits


# ---- main ---------------------------------------------------------------------
if __name__ == "__main__":
    key = jax.random.PRNGKey(0)
    kp, ki, kl = jax.random.split(key, 3)

    params = init_params(kp)
    wslab = pack_params(params)

    input_ids = jax.random.randint(ki, (BATCH, SEQ), 0, VOCAB, dtype=jnp.int32)
    attention_mask = jnp.ones((BATCH, SEQ), jnp.int32).at[1, SEQ - 2:].set(0)
    labels = jax.random.randint(kl, (BATCH,), 0, NUM_LABELS, dtype=jnp.int32)
    x = {"input_ids": input_ids, "attention_mask": attention_mask}

    logits = forward(params, wslab, x)                  # no-label branch
    loss, logits_l = forward(params, wslab, x, labels)  # label branch

    jax.block_until_ready((logits, loss, logits_l))
    assert logits.shape == (BATCH, NUM_LABELS)
    assert logits_l.shape == (BATCH, NUM_LABELS)
    assert loss.shape == ()
    assert bool(jnp.all(jnp.isfinite(logits))) and bool(jnp.isfinite(loss))
    print("KERNEL_OK")
</pallas_src>

<mosaic_0001>
module attributes {stable_mosaic.version = 11 : i64} {
  func.func @fused_forward_kernel(%arg0: memref<16x32xf32, #tpu.memory_space<vmem>>, %arg1: memref<8x1x8xf32, #tpu.memory_space<vmem>>, %arg2: memref<520x128xf32, #tpu.memory_space<vmem>>, %arg3: memref<8x128xf32, #tpu.memory_space<vmem>>) attributes {dimension_semantics = [], scalar_prefetch = 0 : i64, scratch_operands = 0 : i64, tpu.core_type = #tpu.core_type<tc>} {
    %c0 = arith.constant 0 : index
    %c0_0 = arith.constant 0 : index
    %0 = vector.load %arg0[%c0, %c0_0] : memref<16x32xf32, #tpu.memory_space<vmem>>, vector<16x32xf32>
    %c0_1 = arith.constant 0 : index
    %c0_2 = arith.constant 0 : index
    %c0_3 = arith.constant 0 : index
    %1 = vector.load %arg1[%c0_1, %c0_2, %c0_3] : memref<8x1x8xf32, #tpu.memory_space<vmem>>, vector<8x1x8xf32>
    %2 = vector.shape_cast %1 : vector<8x1x8xf32> to vector<8x1x8xf32>
    %3 = vector.broadcast %2 : vector<8x1x8xf32> to vector<8x8x8xf32>
    %c0_4 = arith.constant 0 : index
    %c0_5 = arith.constant 0 : index
    %4 = vector.load %arg2[%c0_4, %c0_5] : memref<520x128xf32, #tpu.memory_space<vmem>>, vector<32x32xf32>
    %cst = arith.constant dense<0.000000e+00> : vector<16x32xf32>
    %5 = tpu.matmul %0, %4, %cst {dimension_numbers = #tpu.dot_dimension_numbers<[1], [0], [0], [1], [0, 0, 1, 1], [], []>} : vector<16x32xf32>, vector<32x32xf32>, vector<16x32xf32> -> vector<16x32xf32>
    %c224 = arith.constant 224 : index
    %c0_6 = arith.constant 0 : index
    %6 = vector.load %arg2[%c224, %c0_6] : memref<520x128xf32, #tpu.memory_space<vmem>>, vector<1x32xf32>
    %7 = vector.broadcast %6 : vector<1x32xf32> to vector<16x32xf32>
    %8 = arith.addf %5, %7 : vector<16x32xf32>
    %c32 = arith.constant 32 : index
    %c0_7 = arith.constant 0 : index
    %9 = vector.load %arg2[%c32, %c0_7] : memref<520x128xf32, #tpu.memory_space<vmem>>, vector<32x32xf32>
    %cst_8 = arith.constant dense<0.000000e+00> : vector<16x32xf32>
    %10 = tpu.matmul %0, %9, %cst_8 {dimension_numbers = #tpu.dot_dimension_numbers<[1], [0], [0], [1], [0, 0, 1, 1], [], []>} : vector<16x32xf32>, vector<32x32xf32>, vector<16x32xf32> -> vector<16x32xf32>
    %c225 = arith.constant 225 : index
    %c0_9 = arith.constant 0 : index
    %11 = vector.load %arg2[%c225, %c0_9] : memref<520x128xf32, #tpu.memory_space<vmem>>, vector<1x32xf32>
    %12 = vector.broadcast %11 : vector<1x32xf32> to vector<16x32xf32>
    %13 = arith.addf %10, %12 : vector<16x32xf32>
    %c64 = arith.constant 64 : index
    %c0_10 = arith.constant 0 : index
    %14 = vector.load %arg2[%c64, %c0_10] : memref<520x128xf32, #tpu.memory_space<vmem>>, vector<32x32xf32>
    %cst_11 = arith.constant dense<0.000000e+00> : vector<16x32xf32>
    %15 = tpu.matmul %0, %14, %cst_11 {dimension_numbers = #tpu.dot_dimension_numbers<[1], [0], [0], [1], [0, 0, 1, 1], [], []>} : vector<16x32xf32>, vector<32x32xf32>, vector<16x32xf32> -> vector<16x32xf32>
    %c226 = arith.constant 226 : index
    %c0_12 = arith.constant 0 : index
    %16 = vector.load %arg2[%c226, %c0_12] : memref<520x128xf32, #tpu.memory_space<vmem>>, vector<1x32xf32>
    %17 = vector.broadcast %16 : vector<1x32xf32> to vector<16x32xf32>
    %18 = arith.addf %15, %17 : vector<16x32xf32>
    %19 = vector.extract_strided_slice %8 {offsets = [0, 0], sizes = [16, 8], strides = [1, 1]} : vector<16x32xf32> to vector<16x8xf32>
    %20 = vector.shape_cast %19 : vector<16x8xf32> to vector<2x8x8xf32>
    %21 = vector.extract_strided_slice %8 {offsets = [0, 8], sizes = [16, 8], strides = [1, 1]} : vector<16x32xf32> to vector<16x8xf32>
    %22 = vector.shape_cast %21 : vector<16x8xf32> to vector<2x8x8xf32>
    %23 = vector.extract_strided_slice %8 {offsets = [0, 16], sizes = [16, 8], strides = [1, 1]} : vector<16x32xf32> to vector<16x8xf32>
    %24 = vector.shape_cast %23 : vector<16x8xf32> to vector<2x8x8xf32>
    %25 = vector.extract_strided_slice %8 {offsets = [0, 24], sizes = [16, 8], strides = [1, 1]} : vector<16x32xf32> to vector<16x8xf32>
    %26 = vector.shape_cast %25 : vector<16x8xf32> to vector<2x8x8xf32>
    %27 = tpu.concatenate %20, %22, %24, %26 in 0 : vector<2x8x8xf32>, vector<2x8x8xf32>, vector<2x8x8xf32>, vector<2x8x8xf32> -> vector<8x8x8xf32>
    %28 = vector.extract_strided_slice %13 {offsets = [0, 0], sizes = [16, 8], strides = [1, 1]} : vector<16x32xf32> to vector<16x8xf32>
    %29 = vector.shape_cast %28 : vector<16x8xf32> to vector<2x8x8xf32>
    %30 = vector.extract_strided_slice %13 {offsets = [0, 8], sizes = [16, 8], strides = [1, 1]} : vector<16x32xf32> to vector<16x8xf32>
    %31 = vector.shape_cast %30 : vector<16x8xf32> to vector<2x8x8xf32>
    %32 = vector.extract_strided_slice %13 {offsets = [0, 16], sizes = [16, 8], strides = [1, 1]} : vector<16x32xf32> to vector<16x8xf32>
    %33 = vector.shape_cast %32 : vector<16x8xf32> to vector<2x8x8xf32>
    %34 = vector.extract_strided_slice %13 {offsets = [0, 24], sizes = [16, 8], strides = [1, 1]} : vector<16x32xf32> to vector<16x8xf32>
    %35 = vector.shape_cast %34 : vector<16x8xf32> to vector<2x8x8xf32>
    %36 = tpu.concatenate %29, %31, %33, %35 in 0 : vector<2x8x8xf32>, vector<2x8x8xf32>, vector<2x8x8xf32>, vector<2x8x8xf32> -> vector<8x8x8xf32>
    %37 = vector.extract_strided_slice %18 {offsets = [0, 0], sizes = [16, 8], strides = [1, 1]} : vector<16x32xf32> to vector<16x8xf32>
    %38 = vector.shape_cast %37 : vector<16x8xf32> to vector<2x8x8xf32>
    %39 = vector.extract_strided_slice %18 {offsets = [0, 8], sizes = [16, 8], strides = [1, 1]} : vector<16x32xf32> to vector<16x8xf32>
    %40 = vector.shape_cast %39 : vector<16x8xf32> to vector<2x8x8xf32>
    %41 = vector.extract_strided_slice %18 {offsets = [0, 16], sizes = [16, 8], strides = [1, 1]} : vector<16x32xf32> to vector<16x8xf32>
    %42 = vector.shape_cast %41 : vector<16x8xf32> to vector<2x8x8xf32>
    %43 = vector.extract_strided_slice %18 {offsets = [0, 24], sizes = [16, 8], strides = [1, 1]} : vector<16x32xf32> to vector<16x8xf32>
    %44 = vector.shape_cast %43 : vector<16x8xf32> to vector<2x8x8xf32>
    %45 = tpu.concatenate %38, %40, %42, %44 in 0 : vector<2x8x8xf32>, vector<2x8x8xf32>, vector<2x8x8xf32>, vector<2x8x8xf32> -> vector<8x8x8xf32>
    "tpu.trace_start"() <{level = 10 : i32, message = "bqd,bkd->bqk"}> : () -> ()
    %cst_13 = arith.constant dense<0.000000e+00> : vector<8x8x8xf32>
    %46 = tpu.matmul %27, %36, %cst_13 {dimension_numbers = #tpu.dot_dimension_numbers<[2], [2], [1], [1], [0, 0, 0, 1, 1, 1], [0], [0]>} : vector<8x8x8xf32>, vector<8x8x8xf32>, vector<8x8x8xf32> -> vector<8x8x8xf32>
    "tpu.trace_stop"() : () -> ()
    %47 = arith.addf %46, %3 : vector<8x8x8xf32>
    %cst_14 = arith.constant dense<0xFF800000> : vector<8x8xf32>
    %48 = vector.multi_reduction <maximumf>, %47, %cst_14 [2] : vector<8x8x8xf32> to vector<8x8xf32>
    %49 = vector.shape_cast %48 : vector<8x8xf32> to vector<8x8x1xf32>
    %50 = vector.broadcast %49 : vector<8x8x1xf32> to vector<8x8x8xf32>
    %51 = arith.subf %47, %50 : vector<8x8x8xf32>
    %52 = math.exp %51 : vector<8x8x8xf32>
    %cst_15 = arith.constant dense<0.000000e+00> : vector<8x8xf32>
    %53 = vector.multi_reduction <add>, %52, %cst_15 [2] : vector<8x8x8xf32> to vector<8x8xf32>
    %54 = vector.shape_cast %53 : vector<8x8xf32> to vector<8x8x1xf32>
    %55 = tpu.reciprocal %54 {approx = true} : vector<8x8x1xf32> -> vector<8x8x1xf32>
    %56 = vector.broadcast %55 : vector<8x8x1xf32> to vector<8x8x8xf32>
    %57 = arith.mulf %52, %56 : vector<8x8x8xf32>
    "tpu.trace_start"() <{level = 10 : i32, message = "bqk,bkd->bqd"}> : () -> ()
    %cst_16 = arith.constant dense<0.000000e+00> : vector<8x8x8xf32>
    %58 = tpu.matmul %57, %45, %cst_16 {dimension_numbers = #tpu.dot_dimension_numbers<[2], [1], [1], [2], [0, 0, 0, 1, 1, 2], [0], [0]>} : vector<8x8x8xf32>, vector<8x8x8xf32>, vector<8x8x8xf32> -> vector<8x8x8xf32>
    "tpu.trace_stop"() : () -> ()
    %59 = vector.extract_strided_slice %58 {offsets = [0, 0, 0], sizes = [2, 8, 8], strides = [1, 1, 1]} : vector<8x8x8xf32> to vector<2x8x8xf32>
    %60 = vector.shape_cast %59 : vector<2x8x8xf32> to vector<16x8xf32>
    %61 = vector.extract_strided_slice %58 {offsets = [2, 0, 0], sizes = [2, 8, 8], strides = [1, 1, 1]} : vector<8x8x8xf32> to vector<2x8x8xf32>
    %62 = vector.shape_cast %61 : vector<2x8x8xf32> to vector<16x8xf32>
    %63 = vector.extract_strided_slice %58 {offsets = [4, 0, 0], sizes = [2, 8, 8], strides = [1, 1, 1]} : vector<8x8x8xf32> to vector<2x8x8xf32>
    %64 = vector.shape_cast %63 : vector<2x8x8xf32> to vector<16x8xf32>
    %65 = vector.extract_strided_slice %58 {offsets = [6, 0, 0], sizes = [2, 8, 8], strides = [1, 1, 1]} : vector<8x8x8xf32> to vector<2x8x8xf32>
    %66 = vector.shape_cast %65 : vector<2x8x8xf32> to vector<16x8xf32>
    %67 = tpu.concatenate %60, %62, %64, %66 in 1 : vector<16x8xf32>, vector<16x8xf32>, vector<16x8xf32>, vector<16x8xf32> -> vector<16x32xf32>
    %c96 = arith.constant 96 : index
    %c0_17 = arith.constant 0 : index
    %68 = vector.load %arg2[%c96, %c0_17] : memref<520x128xf32, #tpu.memory_space<vmem>>, vector<32x32xf32>
    %cst_18 = arith.constant dense<0.000000e+00> : vector<16x32xf32>
    %69 = tpu.matmul %67, %68, %cst_18 {dimension_numbers = #tpu.dot_dimension_numbers<[1], [0], [0], [1], [0, 0, 1, 1], [], []>} : vector<16x32xf32>, vector<32x32xf32>, vector<16x32xf32> -> vector<16x32xf32>
    %c227 = arith.constant 227 : index
    %c0_19 = arith.constant 0 : index
    %70 = vector.load %arg2[%c227, %c0_19] : memref<520x128xf32, #tpu.memory_space<vmem>>, vector<1x32xf32>
    %71 = vector.broadcast %70 : vector<1x32xf32> to vector<16x32xf32>
    %72 = arith.addf %69, %71 : vector<16x32xf32>
    %73 = arith.addf %0, %72 : vector<16x32xf32>
    %c228 = arith.constant 228 : index
    %c0_20 = arith.constant 0 : index
    %74 = vector.load %arg2[%c228, %c0_20] : memref<520x128xf32, #tpu.memory_space<vmem>>, vector<1x32xf32>
    %c229 = arith.constant 229 : index
    %c0_21 = arith.constant 0 : index
    %75 = vector.load %arg2[%c229, %c0_21] : memref<520x128xf32, #tpu.memory_space<vmem>>, vector<1x32xf32>
    %cst_22 = arith.constant dense<0.000000e+00> : vector<16xf32>
    %76 = vector.multi_reduction <add>, %73, %cst_22 [1] : vector<16x32xf32> to vector<16xf32>
    %77 = vector.shape_cast %76 : vector<16xf32> to vector<16x1xf32>
    %cst_23 = arith.constant 3.200000e+01 : f32
    %78 = vector.broadcast %cst_23 : f32 to vector<16x1xf32>
    %79 = arith.divf %77, %78 : vector<16x1xf32>
    %80 = vector.broadcast %79 : vector<16x1xf32> to vector<16x32xf32>
    %81 = arith.subf %73, %80 : vector<16x32xf32>
    %82 = arith.mulf %81, %81 : vector<16x32xf32>
    %cst_24 = arith.constant dense<0.000000e+00> : vector<16xf32>
    %83 = vector.multi_reduction <add>, %82, %cst_24 [1] : vector<16x32xf32> to vector<16xf32>
    %84 = vector.shape_cast %83 : vector<16xf32> to vector<16x1xf32>
    %cst_25 = arith.constant 3.200000e+01 : f32
    %85 = vector.broadcast %cst_25 : f32 to vector<16x1xf32>
    %86 = arith.divf %84, %85 : vector<16x1xf32>
    %87 = vector.broadcast %79 : vector<16x1xf32> to vector<16x32xf32>
    %88 = arith.subf %73, %87 : vector<16x32xf32>
    %cst_26 = arith.constant 9.99999996E-13 : f32
    %89 = vector.broadcast %cst_26 : f32 to vector<16x1xf32>
    %90 = arith.addf %86, %89 : vector<16x1xf32>
    %91 = math.rsqrt %90 : vector<16x1xf32>
    %92 = vector.broadcast %91 : vector<16x1xf32> to vector<16x32xf32>
    %93 = arith.mulf %88, %92 : vector<16x32xf32>
    %94 = vector.broadcast %74 : vector<1x32xf32> to vector<16x32xf32>
    %95 = arith.mulf %93, %94 : vector<16x32xf32>
    %96 = vector.broadcast %75 : vector<1x32xf32> to vector<16x32xf32>
    %97 = arith.addf %95, %96 : vector<16x32xf32>
    %c128 = arith.constant 128 : index
    %c0_27 = arith.constant 0 : index
    %98 = vector.load %arg2[%c128, %c0_27] : memref<520x128xf32, #tpu.memory_space<vmem>>, vector<32x64xf32>
    %cst_28 = arith.constant dense<0.000000e+00> : vector<16x64xf32>
    %99 = tpu.matmul %97, %98, %cst_28 {dimension_numbers = #tpu.dot_dimension_numbers<[1], [0], [0], [1], [0, 0, 1, 1], [], []>} : vector<16x32xf32>, vector<32x64xf32>, vector<16x64xf32> -> vector<16x64xf32>
    %c230 = arith.constant 230 : index
    %c0_29 = arith.constant 0 : index
    %100 = vector.load %arg2[%c230, %c0_29] : memref<520x128xf32, #tpu.memory_space<vmem>>, vector<1x64xf32>
    %101 = vector.broadcast %100 : vector<1x64xf32> to vector<16x64xf32>
    %102 = arith.addf %99, %101 : vector<16x64xf32>
    %cst_30 = arith.constant 5.000000e-01 : f32
    %103 = vector.broadcast %cst_30 : f32 to vector<16x64xf32>
    %104 = arith.mulf %103, %102 : vector<16x64xf32>
    %cst_31 = arith.constant 4.471500e-02 : f32
    %105 = vector.broadcast %cst_31 : f32 to vector<16x64xf32>
    %106 = arith.mulf %105, %102 : vector<16x64xf32>
    %107 = arith.mulf %106, %102 : vector<16x64xf32>
    %108 = arith.mulf %107, %102 : vector<16x64xf32>
    %109 = arith.addf %102, %108 : vector<16x64xf32>
    %cst_32 = arith.constant 0.797884583 : f32
    %110 = vector.broadcast %cst_32 : f32 to vector<16x64xf32>
    %111 = arith.mulf %110, %109 : vector<16x64xf32>
    %112 = math.tanh %111 : vector<16x64xf32>
    %cst_33 = arith.constant 1.000000e+00 : f32
    %113 = vector.broadcast %cst_33 : f32 to vector<16x64xf32>
    %114 = arith.addf %113, %112 : vector<16x64xf32>
    %115 = arith.mulf %104, %114 : vector<16x64xf32>
    %c160 = arith.constant 160 : index
    %c0_34 = arith.constant 0 : index
    %116 = vector.load %arg2[%c160, %c0_34] : memref<520x128xf32, #tpu.memory_space<vmem>>, vector<64x32xf32>
    %cst_35 = arith.constant dense<0.000000e+00> : vector<16x32xf32>
    %117 = tpu.matmul %115, %116, %cst_35 {dimension_numbers = #tpu.dot_dimension_numbers<[1], [0], [0], [1], [0, 0, 1, 1], [], []>} : vector<16x64xf32>, vector<64x32xf32>, vector<16x32xf32> -> vector<16x32xf32>
    %c231 = arith.constant 231 : index
    %c0_36 = arith.constant 0 : index
    %118 = vector.load %arg2[%c231, %c0_36] : memref<520x128xf32, #tpu.memory_space<vmem>>, vector<1x32xf32>
    %119 = vector.broadcast %118 : vector<1x32xf32> to vector<16x32xf32>
    %120 = arith.addf %117, %119 : vector<16x32xf32>
    %121 = arith.addf %97, %120 : vector<16x32xf32>
    %c232 = arith.constant 232 : index
    %c0_37 = arith.constant 0 : index
    %122 = vector.load %arg2[%c232, %c0_37] : memref<520x128xf32, #tpu.memory_space<vmem>>, vector<1x32xf32>
    %c233 = arith.constant 233 : index
    %c0_38 = arith.constant 0 : index
    %123 = vector.load %arg2[%c233, %c0_38] : memref<520x128xf32, #tpu.memory_space<vmem>>, vector<1x32xf32>
    %cst_39 = arith.constant dense<0.000000e+00> : vector<16xf32>
    %124 = vector.multi_reduction <add>, %121, %cst_39 [1] : vector<16x32xf32> to vector<16xf32>
    %125 = vector.shape_cast %124 : vector<16xf32> to vector<16x1xf32>
    %cst_40 = arith.constant 3.200000e+01 : f32
    %126 = vector.broadcast %cst_40 : f32 to vector<16x1xf32>
    %127 = arith.divf %125, %126 : vector<16x1xf32>
    %128 = vector.broadcast %127 : vector<16x1xf32> to vector<16x32xf32>
    %129 = arith.subf %121, %128 : vector<16x32xf32>
    %130 = arith.mulf %129, %129 : vector<16x32xf32>
    %cst_41 = arith.constant dense<0.000000e+00> : vector<16xf32>
    %131 = vector.multi_reduction <add>, %130, %cst_41 [1] : vector<16x32xf32> to vector<16xf32>
    %132 = vector.shape_cast %131 : vector<16xf32> to vector<16x1xf32>
    %cst_42 = arith.constant 3.200000e+01 : f32
    %133 = vector.broadcast %cst_42 : f32 to vector<16x1xf32>
    %134 = arith.divf %132, %133 : vector<16x1xf32>
    %135 = vector.broadcast %127 : vector<16x1xf32> to vector<16x32xf32>
    %136 = arith.subf %121, %135 : vector<16x32xf32>
    %cst_43 = arith.constant 9.99999996E-13 : f32
    %137 = vector.broadcast %cst_43 : f32 to vector<16x1xf32>
    %138 = arith.addf %134, %137 : vector<16x1xf32>
    %139 = math.rsqrt %138 : vector<16x1xf32>
    %140 = vector.broadcast %139 : vector<16x1xf32> to vector<16x32xf32>
    %141 = arith.mulf %136, %140 : vector<16x32xf32>
    %142 = vector.broadcast %122 : vector<1x32xf32> to vector<16x32xf32>
    %143 = arith.mulf %141, %142 : vector<16x32xf32>
    %144 = vector.broadcast %123 : vector<1x32xf32> to vector<16x32xf32>
    %145 = arith.addf %143, %144 : vector<16x32xf32>
    %c240 = arith.constant 240 : index
    %c0_44 = arith.constant 0 : index
    %146 = vector.load %arg2[%c240, %c0_44] : memref<520x128xf32, #tpu.memory_space<vmem>>, vector<32x32xf32>
    %cst_45 = arith.constant dense<0.000000e+00> : vector<16x32xf32>
    %147 = tpu.matmul %145, %146, %cst_45 {dimension_numbers = #tpu.dot_dimension_numbers<[1], [0], [0], [1], [0, 0, 1, 1], [], []>} : vector<16x32xf32>, vector<32x32xf32>, vector<16x32xf32> -> vector<16x32xf32>
    %c464 = arith.constant 464 : index
    %c0_46 = arith.constant 0 : index
    %148 = vector.load %arg2[%c464, %c0_46] : memref<520x128xf32, #tpu.memory_space<vmem>>, vector<1x32xf32>
    %149 = vector.broadcast %148 : vector<1x32xf32> to vector<16x32xf32>
    %150 = arith.addf %147, %149 : vector<16x32xf32>
    %c272 = arith.constant 272 : index
    %c0_47 = arith.constant 0 : index
    %151 = vector.load %arg2[%c272, %c0_47] : memref<520x128xf32, #tpu.memory_space<vmem>>, vector<32x32xf32>
    %cst_48 = arith.constant dense<0.000000e+00> : vector<16x32xf32>
    %152 = tpu.matmul %145, %151, %cst_48 {dimension_numbers = #tpu.dot_dimension_numbers<[1], [0], [0], [1], [0, 0, 1, 1], [], []>} : vector<16x32xf32>, vector<32x32xf32>, vector<16x32xf32> -> vector<16x32xf32>
    %c465 = arith.constant 465 : index
    %c0_49 = arith.constant 0 : index
    %153 = vector.load %arg2[%c465, %c0_49] : memref<520x128xf32, #tpu.memory_space<vmem>>, vector<1x32xf32>
    %154 = vector.broadcast %153 : vector<1x32xf32> to vector<16x32xf32>
    %155 = arith.addf %152, %154 : vector<16x32xf32>
    %c304 = arith.constant 304 : index
    %c0_50 = arith.constant 0 : index
    %156 = vector.load %arg2[%c304, %c0_50] : memref<520x128xf32, #tpu.memory_space<vmem>>, vector<32x32xf32>
    %cst_51 = arith.constant dense<0.000000e+00> : vector<16x32xf32>
    %157 = tpu.matmul %145, %156, %cst_51 {dimension_numbers = #tpu.dot_dimension_numbers<[1], [0], [0], [1], [0, 0, 1, 1], [], []>} : vector<16x32xf32>, vector<32x32xf32>, vector<16x32xf32> -> vector<16x32xf32>
    %c466 = arith.constant 466 : index
    %c0_52 = arith.constant 0 : index
    %158 = vector.load %arg2[%c466, %c0_52] : memref<520x128xf32, #tpu.memory_space<vmem>>, vector<1x32xf32>
    %159 = vector.broadcast %158 : vector<1x32xf32> to vector<16x32xf32>
    %160 = arith.addf %157, %159 : vector<16x32xf32>
    %161 = vector.extract_strided_slice %150 {offsets = [0, 0], sizes = [16, 8], strides = [1, 1]} : vector<16x32xf32> to vector<16x8xf32>
    %162 = vector.shape_cast %161 : vector<16x8xf32> to vector<2x8x8xf32>
    %163 = vector.extract_strided_slice %150 {offsets = [0, 8], sizes = [16, 8], strides = [1, 1]} : vector<16x32xf32> to vector<16x8xf32>
    %164 = vector.shape_cast %163 : vector<16x8xf32> to vector<2x8x8xf32>
    %165 = vector.extract_strided_slice %150 {offsets = [0, 16], sizes = [16, 8], strides = [1, 1]} : vector<16x32xf32> to vector<16x8xf32>
    %166 = vector.shape_cast %165 : vector<16x8xf32> to vector<2x8x8xf32>
    %167 = vector.extract_strided_slice %150 {offsets = [0, 24], sizes = [16, 8], strides = [1, 1]} : vector<16x32xf32> to vector<16x8xf32>
    %168 = vector.shape_cast %167 : vector<16x8xf32> to vector<2x8x8xf32>
    %169 = tpu.concatenate %162, %164, %166, %168 in 0 : vector<2x8x8xf32>, vector<2x8x8xf32>, vector<2x8x8xf32>, vector<2x8x8xf32> -> vector<8x8x8xf32>
    %170 = vector.extract_strided_slice %155 {offsets = [0, 0], sizes = [16, 8], strides = [1, 1]} : vector<16x32xf32> to vector<16x8xf32>
    %171 = vector.shape_cast %170 : vector<16x8xf32> to vector<2x8x8xf32>
    %172 = vector.extract_strided_slice %155 {offsets = [0, 8], sizes = [16, 8], strides = [1, 1]} : vector<16x32xf32> to vector<16x8xf32>
    %173 = vector.shape_cast %172 : vector<16x8xf32> to vector<2x8x8xf32>
    %174 = vector.extract_strided_slice %155 {offsets = [0, 16], sizes = [16, 8], strides = [1, 1]} : vector<16x32xf32> to vector<16x8xf32>
    %175 = vector.shape_cast %174 : vector<16x8xf32> to vector<2x8x8xf32>
    %176 = vector.extract_strided_slice %155 {offsets = [0, 24], sizes = [16, 8], strides = [1, 1]} : vector<16x32xf32> to vector<16x8xf32>
    %177 = vector.shape_cast %176 : vector<16x8xf32> to vector<2x8x8xf32>
    %178 = tpu.concatenate %171, %173, %175, %177 in 0 : vector<2x8x8xf32>, vector<2x8x8xf32>, vector<2x8x8xf32>, vector<2x8x8xf32> -> vector<8x8x8xf32>
    %179 = vector.extract_strided_slice %160 {offsets = [0, 0], sizes = [16, 8], strides = [1, 1]} : vector<16x32xf32> to vector<16x8xf32>
    %180 = vector.shape_cast %179 : vector<16x8xf32> to vector<2x8x8xf32>
    %181 = vector.extract_strided_slice %160 {offsets = [0, 8], sizes = [16, 8], strides = [1, 1]} : vector<16x32xf32> to vector<16x8xf32>
    %182 = vector.shape_cast %181 : vector<16x8xf32> to vector<2x8x8xf32>
    %183 = vector.extract_strided_slice %160 {offsets = [0, 16], sizes = [16, 8], strides = [1, 1]} : vector<16x32xf32> to vector<16x8xf32>
    %184 = vector.shape_cast %183 : vector<16x8xf32> to vector<2x8x8xf32>
    %185 = vector.extract_strided_slice %160 {offsets = [0, 24], sizes = [16, 8], strides = [1, 1]} : vector<16x32xf32> to vector<16x8xf32>
    %186 = vector.shape_cast %185 : vector<16x8xf32> to vector<2x8x8xf32>
    %187 = tpu.concatenate %180, %182, %184, %186 in 0 : vector<2x8x8xf32>, vector<2x8x8xf32>, vector<2x8x8xf32>, vector<2x8x8xf32> -> vector<8x8x8xf32>
    "tpu.trace_start"() <{level = 10 : i32, message = "bqd,bkd->bqk"}> : () -> ()
    %cst_53 = arith.constant dense<0.000000e+00> : vector<8x8x8xf32>
    %188 = tpu.matmul %169, %178, %cst_53 {dimension_numbers = #tpu.dot_dimension_numbers<[2], [2], [1], [1], [0, 0, 0, 1, 1, 1], [0], [0]>} : vector<8x8x8xf32>, vector<8x8x8xf32>, vector<8x8x8xf32> -> vector<8x8x8xf32>
    "tpu.trace_stop"() : () -> ()
    %189 = arith.addf %188, %3 : vector<8x8x8xf32>
    %cst_54 = arith.constant dense<0xFF800000> : vector<8x8xf32>
    %190 = vector.multi_reduction <maximumf>, %189, %cst_54 [2] : vector<8x8x8xf32> to vector<8x8xf32>
    %191 = vector.shape_cast %190 : vector<8x8xf32> to vector<8x8x1xf32>
    %192 = vector.broadcast %191 : vector<8x8x1xf32> to vector<8x8x8xf32>
    %193 = arith.subf %189, %192 : vector<8x8x8xf32>
    %194 = math.exp %193 : vector<8x8x8xf32>
    %cst_55 = arith.constant dense<0.000000e+00> : vector<8x8xf32>
    %195 = vector.multi_reduction <add>, %194, %cst_55 [2] : vector<8x8x8xf32> to vector<8x8xf32>
    %196 = vector.shape_cast %195 : vector<8x8xf32> to vector<8x8x1xf32>
    %197 = tpu.reciprocal %196 {approx = true} : vector<8x8x1xf32> -> vector<8x8x1xf32>
    %198 = vector.broadcast %197 : vector<8x8x1xf32> to vector<8x8x8xf32>
    %199 = arith.mulf %194, %198 : vector<8x8x8xf32>
    "tpu.trace_start"() <{level = 10 : i32, message = "bqk,bkd->bqd"}> : () -> ()
    %cst_56 = arith.constant dense<0.000000e+00> : vector<8x8x8xf32>
    %200 = tpu.matmul %199, %187, %cst_56 {dimension_numbers = #tpu.dot_dimension_numbers<[2], [1], [1], [2], [0, 0, 0, 1, 1, 2], [0], [0]>} : vector<8x8x8xf32>, vector<8x8x8xf32>, vector<8x8x8xf32> -> vector<8x8x8xf32>
    "tpu.trace_stop"() : () -> ()
    %201 = vector.extract_strided_slice %200 {offsets = [0, 0, 0], sizes = [2, 8, 8], strides = [1, 1, 1]} : vector<8x8x8xf32> to vector<2x8x8xf32>
    %202 = vector.shape_cast %201 : vector<2x8x8xf32> to vector<16x8xf32>
    %203 = vector.extract_strided_slice %200 {offsets = [2, 0, 0], sizes = [2, 8, 8], strides = [1, 1, 1]} : vector<8x8x8xf32> to vector<2x8x8xf32>
    %204 = vector.shape_cast %203 : vector<2x8x8xf32> to vector<16x8xf32>
    %205 = vector.extract_strided_slice %200 {offsets = [4, 0, 0], sizes = [2, 8, 8], strides = [1, 1, 1]} : vector<8x8x8xf32> to vector<2x8x8xf32>
    %206 = vector.shape_cast %205 : vector<2x8x8xf32> to vector<16x8xf32>
    %207 = vector.extract_strided_slice %200 {offsets = [6, 0, 0], sizes = [2, 8, 8], strides = [1, 1, 1]} : vector<8x8x8xf32> to vector<2x8x8xf32>
    %208 = vector.shape_cast %207 : vector<2x8x8xf32> to vector<16x8xf32>
    %209 = tpu.concatenate %202, %204, %206, %208 in 1 : vector<16x8xf32>, vector<16x8xf32>, vector<16x8xf32>, vector<16x8xf32> -> vector<16x32xf32>
    %c336 = arith.constant 336 : index
    %c0_57 = arith.constant 0 : index
    %210 = vector.load %arg2[%c336, %c0_57] : memref<520x128xf32, #tpu.memory_space<vmem>>, vector<32x32xf32>
    %cst_58 = arith.constant dense<0.000000e+00> : vector<16x32xf32>
    %211 = tpu.matmul %209, %210, %cst_58 {dimension_numbers = #tpu.dot_dimension_numbers<[1], [0], [0], [1], [0, 0, 1, 1], [], []>} : vector<16x32xf32>, vector<32x32xf32>, vector<16x32xf32> -> vector<16x32xf32>
    %c467 = arith.constant 467 : index
    %c0_59 = arith.constant 0 : index
    %212 = vector.load %arg2[%c467, %c0_59] : memref<520x128xf32, #tpu.memory_space<vmem>>, vector<1x32xf32>
    %213 = vector.broadcast %212 : vector<1x32xf32> to vector<16x32xf32>
    %214 = arith.addf %211, %213 : vector<16x32xf32>
    %215 = arith.addf %145, %214 : vector<16x32xf32>
    %c468 = arith.constant 468 : index
    %c0_60 = arith.constant 0 : index
    %216 = vector.load %arg2[%c468, %c0_60] : memref<520x128xf32, #tpu.memory_space<vmem>>, vector<1x32xf32>
    %c469 = arith.constant 469 : index
    %c0_61 = arith.constant 0 : index
    %217 = vector.load %arg2[%c469, %c0_61] : memref<520x128xf32, #tpu.memory_space<vmem>>, vector<1x32xf32>
    %cst_62 = arith.constant dense<0.000000e+00> : vector<16xf32>
    %218 = vector.multi_reduction <add>, %215, %cst_62 [1] : vector<16x32xf32> to vector<16xf32>
    %219 = vector.shape_cast %218 : vector<16xf32> to vector<16x1xf32>
    %cst_63 = arith.constant 3.200000e+01 : f32
    %220 = vector.broadcast %cst_63 : f32 to vector<16x1xf32>
    %221 = arith.divf %219, %220 : vector<16x1xf32>
    %222 = vector.broadcast %221 : vector<16x1xf32> to vector<16x32xf32>
    %223 = arith.subf %215, %222 : vector<16x32xf32>
    %224 = arith.mulf %223, %223 : vector<16x32xf32>
    %cst_64 = arith.constant dense<0.000000e+00> : vector<16xf32>
    %225 = vector.multi_reduction <add>, %224, %cst_64 [1] : vector<16x32xf32> to vector<16xf32>
    %226 = vector.shape_cast %225 : vector<16xf32> to vector<16x1xf32>
    %cst_65 = arith.constant 3.200000e+01 : f32
    %227 = vector.broadcast %cst_65 : f32 to vector<16x1xf32>
    %228 = arith.divf %226, %227 : vector<16x1xf32>
    %229 = vector.broadcast %221 : vector<16x1xf32> to vector<16x32xf32>
    %230 = arith.subf %215, %229 : vector<16x32xf32>
    %cst_66 = arith.constant 9.99999996E-13 : f32
    %231 = vector.broadcast %cst_66 : f32 to vector<16x1xf32>
    %232 = arith.addf %228, %231 : vector<16x1xf32>
    %233 = math.rsqrt %232 : vector<16x1xf32>
    %234 = vector.broadcast %233 : vector<16x1xf32> to vector<16x32xf32>
    %235 = arith.mulf %230, %234 : vector<16x32xf32>
    %236 = vector.broadcast %216 : vector<1x32xf32> to vector<16x32xf32>
    %237 = arith.mulf %235, %236 : vector<16x32xf32>
    %238 = vector.broadcast %217 : vector<1x32xf32> to vector<16x32xf32>
    %239 = arith.addf %237, %238 : vector<16x32xf32>
    %c368 = arith.constant 368 : index
    %c0_67 = arith.constant 0 : index
    %240 = vector.load %arg2[%c368, %c0_67] : memref<520x128xf32, #tpu.memory_space<vmem>>, vector<32x64xf32>
    %cst_68 = arith.constant dense<0.000000e+00> : vector<16x64xf32>
    %241 = tpu.matmul %239, %240, %cst_68 {dimension_numbers = #tpu.dot_dimension_numbers<[1], [0], [0], [1], [0, 0, 1, 1], [], []>} : vector<16x32xf32>, vector<32x64xf32>, vector<16x64xf32> -> vector<16x64xf32>
    %c470 = arith.constant 470 : index
    %c0_69 = arith.constant 0 : index
    %242 = vector.load %arg2[%c470, %c0_69] : memref<520x128xf32, #tpu.memory_space<vmem>>, vector<1x64xf32>
    %243 = vector.broadcast %242 : vector<1x64xf32> to vector<16x64xf32>
    %244 = arith.addf %241, %243 : vector<16x64xf32>
    %cst_70 = arith.constant 5.000000e-01 : f32
    %245 = vector.broadcast %cst_70 : f32 to vector<16x64xf32>
    %246 = arith.mulf %245, %244 : vector<16x64xf32>
    %cst_71 = arith.constant 4.471500e-02 : f32
    %247 = vector.broadcast %cst_71 : f32 to vector<16x64xf32>
    %248 = arith.mulf %247, %244 : vector<16x64xf32>
    %249 = arith.mulf %248, %244 : vector<16x64xf32>
    %250 = arith.mulf %249, %244 : vector<16x64xf32>
    %251 = arith.addf %244, %250 : vector<16x64xf32>
    %cst_72 = arith.constant 0.797884583 : f32
    %252 = vector.broadcast %cst_72 : f32 to vector<16x64xf32>
    %253 = arith.mulf %252, %251 : vector<16x64xf32>
    %254 = math.tanh %253 : vector<16x64xf32>
    %cst_73 = arith.constant 1.000000e+00 : f32
    %255 = vector.broadcast %cst_73 : f32 to vector<16x64xf32>
    %256 = arith.addf %255, %254 : vector<16x64xf32>
    %257 = arith.mulf %246, %256 : vector<16x64xf32>
    %c400 = arith.constant 400 : index
    %c0_74 = arith.constant 0 : index
    %258 = vector.load %arg2[%c400, %c0_74] : memref<520x128xf32, #tpu.memory_space<vmem>>, vector<64x32xf32>
    %cst_75 = arith.constant dense<0.000000e+00> : vector<16x32xf32>
    %259 = tpu.matmul %257, %258, %cst_75 {dimension_numbers = #tpu.dot_dimension_numbers<[1], [0], [0], [1], [0, 0, 1, 1], [], []>} : vector<16x64xf32>, vector<64x32xf32>, vector<16x32xf32> -> vector<16x32xf32>
    %c471 = arith.constant 471 : index
    %c0_76 = arith.constant 0 : index
    %260 = vector.load %arg2[%c471, %c0_76] : memref<520x128xf32, #tpu.memory_space<vmem>>, vector<1x32xf32>
    %261 = vector.broadcast %260 : vector<1x32xf32> to vector<16x32xf32>
    %262 = arith.addf %259, %261 : vector<16x32xf32>
    %263 = arith.addf %239, %262 : vector<16x32xf32>
    %c472 = arith.constant 472 : index
    %c0_77 = arith.constant 0 : index
    %264 = vector.load %arg2[%c472, %c0_77] : memref<520x128xf32, #tpu.memory_space<vmem>>, vector<1x32xf32>
    %c473 = arith.constant 473 : index
    %c0_78 = arith.constant 0 : index
    %265 = vector.load %arg2[%c473, %c0_78] : memref<520x128xf32, #tpu.memory_space<vmem>>, vector<1x32xf32>
    %cst_79 = arith.constant dense<0.000000e+00> : vector<16xf32>
    %266 = vector.multi_reduction <add>, %263, %cst_79 [1] : vector<16x32xf32> to vector<16xf32>
    %267 = vector.shape_cast %266 : vector<16xf32> to vector<16x1xf32>
    %cst_80 = arith.constant 3.200000e+01 : f32
    %268 = vector.broadcast %cst_80 : f32 to vector<16x1xf32>
    %269 = arith.divf %267, %268 : vector<16x1xf32>
    %270 = vector.broadcast %269 : vector<16x1xf32> to vector<16x32xf32>
    %271 = arith.subf %263, %270 : vector<16x32xf32>
    %272 = arith.mulf %271, %271 : vector<16x32xf32>
    %cst_81 = arith.constant dense<0.000000e+00> : vector<16xf32>
    %273 = vector.multi_reduction <add>, %272, %cst_81 [1] : vector<16x32xf32> to vector<16xf32>
    %274 = vector.shape_cast %273 : vector<16xf32> to vector<16x1xf32>
    %cst_82 = arith.constant 3.200000e+01 : f32
    %275 = vector.broadcast %cst_82 : f32 to vector<16x1xf32>
    %276 = arith.divf %274, %275 : vector<16x1xf32>
    %277 = vector.broadcast %269 : vector<16x1xf32> to vector<16x32xf32>
    %278 = arith.subf %263, %277 : vector<16x32xf32>
    %cst_83 = arith.constant 9.99999996E-13 : f32
    %279 = vector.broadcast %cst_83 : f32 to vector<16x1xf32>
    %280 = arith.addf %276, %279 : vector<16x1xf32>
    %281 = math.rsqrt %280 : vector<16x1xf32>
    %282 = vector.broadcast %281 : vector<16x1xf32> to vector<16x32xf32>
    %283 = arith.mulf %278, %282 : vector<16x32xf32>
    %284 = vector.broadcast %264 : vector<1x32xf32> to vector<16x32xf32>
    %285 = arith.mulf %283, %284 : vector<16x32xf32>
    %286 = vector.broadcast %265 : vector<1x32xf32> to vector<16x32xf32>
    %287 = arith.addf %285, %286 : vector<16x32xf32>
    %288 = vector.shape_cast %287 : vector<16x32xf32> to vector<2x8x32xf32>
    %289 = vector.extract_strided_slice %288 {offsets = [0, 0, 0], sizes = [2, 1, 32], strides = [1, 1, 1]} : vector<2x8x32xf32> to vector<2x1x32xf32>
    %290 = vector.shape_cast %289 : vector<2x1x32xf32> to vector<2x32xf32>
    %cst_84 = arith.constant 0.000000e+00 : f32
    %291 = vector.broadcast %cst_84 : f32 to vector<6x32xf32>
    %292 = tpu.concatenate %290, %291 in 0 : vector<2x32xf32>, vector<6x32xf32> -> vector<8x32xf32>
    %c480 = arith.constant 480 : index
    %c0_85 = arith.constant 0 : index
    %293 = vector.load %arg2[%c480, %c0_85] : memref<520x128xf32, #tpu.memory_space<vmem>>, vector<32x128xf32>
    %cst_86 = arith.constant dense<0.000000e+00> : vector<8x128xf32>
    %294 = tpu.matmul %292, %293, %cst_86 {dimension_numbers = #tpu.dot_dimension_numbers<[1], [0], [0], [1], [0, 0, 1, 1], [], []>} : vector<8x32xf32>, vector<32x128xf32>, vector<8x128xf32> -> vector<8x128xf32>
    %c512 = arith.constant 512 : index
    %c0_87 = arith.constant 0 : index
    %295 = vector.load %arg2[%c512, %c0_87] : memref<520x128xf32, #tpu.memory_space<vmem>>, vector<1x128xf32>
    %296 = vector.broadcast %295 : vector<1x128xf32> to vector<8x128xf32>
    %297 = arith.addf %294, %296 : vector<8x128xf32>
    %c0_88 = arith.constant 0 : index
    %c0_89 = arith.constant 0 : index
    %298 = vector.load %arg3[%c0_88, %c0_89] : memref<8x128xf32, #tpu.memory_space<vmem>>, vector<8x128xf32>
    tpu.vector_store %arg3[%c0_88, %c0_89], %297 {strides = array<i32>} : memref<8x128xf32, #tpu.memory_space<vmem>>, vector<8x128xf32>,
    return
  }
}

</mosaic_0001>

<llo_original>
// kernel: tpu_custom_call.1
$region0: #{tpu_custom_call.1}
  #allocation0 [shape = 'u32[]', space=smem, size = 0x4, offset = 0x4, fixed_abs, tag = 'smem constant byte address 0x4 - core index']
  #allocation1 [shape = 'u32[72,128]{1,0:T(1,128)}', space=vmem, size = 0x9000, scoped, tag = 'internal scratch']
  %s0 = inlined_call_operand.hbm [shape: f32[16,32], index: 0, kind: input, shape index: {}]
  %s1 = inlined_call_operand.hbm [shape: f32[8,1,8], index: 1, kind: input, shape index: {}]
  %s2 = inlined_call_operand.hbm [shape: f32[520,128], index: 2, kind: input, shape index: {}]
  %s3 = inlined_call_operand.hbm [shape: f32[8,128], index: 3, kind: output, shape index: {}]
  %s4 = sld [smem:[#allocation0]]
  $region34: #{tpu_custom_call.1} parent=0
    _
  %s6 = ssub.s32 1, %s4
  %s7 = scalar_select 0, %s6, %s4
  $region1: #{tpu_custom_call.1} parent=0
    #allocation2 [shape = 'u8[8192]{0}', space=vmem, size = 0x2000, scoped, tag = 'input window, operand 0, single buffered']
    #allocation3 [shape = 's32[1]{0}', space=sflag, size = 0x4, scoped, tag = 'scoped memory for tpu_custom_call.1']
    #allocation4 [shape = 's32[1]{0}', space=sflag, size = 0x4, scoped, tag = 'scoped memory for tpu_custom_call.1']
    #allocation5 [shape = 'u8[4096]{0}', space=vmem, size = 0x1000, scoped, tag = 'input window, operand 1, single buffered']
    #allocation6 [shape = 's32[1]{0}', space=sflag, size = 0x4, scoped, tag = 'scoped memory for tpu_custom_call.1']
    #allocation7 [shape = 'u8[266240]{0}', space=vmem, size = 0x41000, scoped, tag = 'input window, operand 2, single buffered']
    #allocation8 [shape = 'u8[4096]{0}', space=vmem, size = 0x1000, scoped, tag = 'output window, operand 0, single buffered']
    %8 = vsyncpa [#allocation3], 0
    %9 = vsyncpa [#allocation6], 0
    %10 = vsyncpa [#allocation4], 0
    // Predicated region
    $region2: #{tpu_custom_call.1} parent=1 // pred_check
      _
    $region3: #{tpu_custom_call.1} parent=1 // pred_check_branch
      %12 = sbr.rel (0) target = $region5
    $region4: #{tpu_custom_call.1} parent=1 // pred_region
      %14 = vsyncadd [#allocation3], 0
      %s15 = sshll.u32 %s0, 4
      %s16 = int_to_ptr.hbm [resolvable:$true] %s15
      %s17 = sshll.u32 [#allocation2], 4
      %s18 = int_to_ptr.vmem [resolvable:$true] %s17
      %23 = dma.hbm_to_vmem [thread:$0]  %s16, 256, %s18, [#allocation3], 128, 128, 8
    $region5: #{tpu_custom_call.1} parent=1 // pred_fallthru
      _
    // Predicated region
    $region6: #{tpu_custom_call.1} parent=1 // pred_check
      _
    $region7: #{tpu_custom_call.1} parent=1 // pred_check_branch
      %25 = sbr.rel (0) target = $region9
    $region8: #{tpu_custom_call.1} parent=1 // pred_region
      %27 = vsyncadd [#allocation6], 0
      %s28 = sshll.u32 %s1, 4
      %s29 = int_to_ptr.hbm [resolvable:$true] %s28
      %s30 = sshll.u32 [#allocation5], 4
      %s31 = int_to_ptr.vmem [resolvable:$true] %s30
      %36 = dma.hbm_to_vmem [thread:$0]  %s29, 128, %s31, [#allocation6], 16, 16, 1
    $region9: #{tpu_custom_call.1} parent=1 // pred_fallthru
      _
    // Predicated region
    $region10: #{tpu_custom_call.1} parent=1 // pred_check
      _
    $region11: #{tpu_custom_call.1} parent=1 // pred_check_branch
      %38 = sbr.rel (0) target = $region13
    $region12: #{tpu_custom_call.1} parent=1 // pred_region
      %40 = vsyncadd [#allocation6], 0
      %s41 = sshll.u32 %s2, 4
      %s42 = int_to_ptr.hbm [resolvable:$true] %s41
      %s43 = sshll.u32 [#allocation7], 4
      %s44 = int_to_ptr.vmem [resolvable:$true] %s43
      %49 = dma.hbm_to_vmem [thread:$0]  %s42, 8320, %s44, [#allocation6], 128, 128, 8
    $region13: #{tpu_custom_call.1} parent=1 // pred_fallthru
      _
    // Predicated region
    $region14: #{tpu_custom_call.1} parent=1 // pred_check
      _
    $region15: #{tpu_custom_call.1} parent=1 // pred_check_branch
      %51 = sbr.rel (0) target = $region17
    $region16: #{tpu_custom_call.1} parent=1 // pred_region
      %53 = dma.done [#allocation3], 256
    $region17: #{tpu_custom_call.1} parent=1 // pred_fallthru
      _
    // Predicated region
    $region18: #{tpu_custom_call.1} parent=1 // pred_check
      _
    $region19: #{tpu_custom_call.1} parent=1 // pred_check_branch
      %55 = sbr.rel (0) target = $region21
    $region20: #{tpu_custom_call.1} parent=1 // pred_region
      %57 = dma.done [#allocation6], 128
    $region21: #{tpu_custom_call.1} parent=1 // pred_fallthru
      _
    // Predicated region
    $region22: #{tpu_custom_call.1} parent=1 // pred_check
      _
    $region23: #{tpu_custom_call.1} parent=1 // pred_check_branch
      %59 = sbr.rel (0) target = $region25
    $region24: #{tpu_custom_call.1} parent=1 // pred_region
      %61 = dma.done [#allocation6], 8320
    $region25: #{tpu_custom_call.1} parent=1 // pred_fallthru
      _
    %v62 = vld [vmem:[#allocation2] sm:$0xff]
    %v63 = vld [vmem:[#allocation2 + $0x8] sm:$0xff]
    %v64 = vld [vmem:[#allocation5] sm:$0x1]
    %v65 = vld [vmem:[#allocation5 + $0x1] sm:$0x1]
    %v66 = vld [vmem:[#allocation5 + $0x2] sm:$0x1]
    %v67 = vld [vmem:[#allocation5 + $0x3] sm:$0x1]
    %v68 = vld [vmem:[#allocation5 + $0x4] sm:$0x1]
    %v69 = vld [vmem:[#allocation5 + $0x5] sm:$0x1]
    %v70 = vld [vmem:[#allocation5 + $0x6] sm:$0x1]
    %v71 = vld [vmem:[#allocation5 + $0x7] sm:$0x1]
    %v80 = vperm.slane %v64, 0
    %v81 = vperm.slane %v65, 0
    %v82 = vperm.slane %v66, 0
    %v83 = vperm.slane %v67, 0
    %v84 = vperm.slane %v68, 0
    %v85 = vperm.slane %v69, 0
    %v86 = vperm.slane %v70, 0
    %v87 = vperm.slane %v71, 0
    %v96 = vld [vmem:[#allocation7] sm:$0xff]
    %v97 = vld [vmem:[#allocation7 + $0x8] sm:$0xff]
    %v98 = vld [vmem:[#allocation7 + $0x10] sm:$0xff]
    %v99 = vld [vmem:[#allocation7 + $0x18] sm:$0xff]
    %v100 = vld [vmem:[#allocation7 + $0xe0] sm:$0x1]
    %v101 = vperm.slane %v100, 0
    %vm102 = vcmask 261120
    %v104 = vsel %vm102, %v62, 0
    %v107 = vsel %vm102, %v63, 0
    %109 = vmatpush.msra.mxu0 0.0
    %110 = vmatpush.msra.mxu0 0.0
    %111 = vmatpush.msra.mxu0 0.0
    %112 = vmatpush.msra.mxu0 0.0
    %113 = vmatpush.msra.mxu0 0.0
    %114 = vmatpush.msra.mxu0 0.0
    %115 = vmatpush.msra.mxu0 0.0
    %116 = vmatpush.msra.mxu0 0.0
    %117 = vmatpush.msra.mxu0 0.0
    %118 = vmatpush.msra.mxu0 0.0
    %119 = vmatpush.msra.mxu0 0.0
    %120 = vmatpush.msra.mxu0 0.0
    %121 = vmatpush.msra.mxu0 %v99
    %122 = vmatpush.msra.mxu0 %v98
    %123 = vmatpush.msra.mxu0 %v97
    %124 = vmatpush.msra.mxu0 %v96
    %125 = vmatmul.f32.gmra.mxu0 %v104
    %v126 = vpop.f32.mrf.mxu0
    %v127 = vadd.f32 %v101, %v126
    %128 = vmatmul.f32.gmra.mxu0 %v107
    %v129 = vpop.f32.mrf.mxu0
    %v130 = vadd.f32 %v101, %v129
    %131 = vdwg.mxu0
    %v132 = vld [vmem:[#allocation7 + $0x20] sm:$0xff]
    %v133 = vld [vmem:[#allocation7 + $0x28] sm:$0xff]
    %v134 = vld [vmem:[#allocation7 + $0x30] sm:$0xff]
    %v135 = vld [vmem:[#allocation7 + $0x38] sm:$0xff]
    %v136 = vld [vmem:[#allocation7 + $0xe1] sm:$0x1]
    %v137 = vperm.slane %v136, 0
    %138 = vmatpush.msra.mxu0 0.0
    %139 = vmatpush.msra.mxu0 0.0
    %140 = vmatpush.msra.mxu0 0.0
    %141 = vmatpush.msra.mxu0 0.0
    %142 = vmatpush.msra.mxu0 0.0
    %143 = vmatpush.msra.mxu0 0.0
    %144 = vmatpush.msra.mxu0 0.0
    %145 = vmatpush.msra.mxu0 0.0
    %146 = vmatpush.msra.mxu0 0.0
    %147 = vmatpush.msra.mxu0 0.0
    %148 = vmatpush.msra.mxu0 0.0
    %149 = vmatpush.msra.mxu0 0.0
    %150 = vmatpush.msra.mxu0 %v135
    %151 = vmatpush.msra.mxu0 %v134
    %152 = vmatpush.msra.mxu0 %v133
    %153 = vmatpush.msra.mxu0 %v132
    %154 = vmatmul.f32.gmra.mxu0 %v104
    %v155 = vpop.f32.mrf.mxu0
    %v156 = vadd.f32 %v137, %v155
    %157 = vmatmul.f32.gmra.mxu0 %v107
    %v158 = vpop.f32.mrf.mxu0
    %v159 = vadd.f32 %v137, %v158
    %160 = vdwg.mxu0
    %v161 = vld [vmem:[#allocation7 + $0x40] sm:$0xff]
    %v162 = vld [vmem:[#allocation7 + $0x48] sm:$0xff]
    %v163 = vld [vmem:[#allocation7 + $0x50] sm:$0xff]
    %v164 = vld [vmem:[#allocation7 + $0x58] sm:$0xff]
    %v165 = vld [vmem:[#allocation7 + $0xe2] sm:$0x1]
    %v166 = vperm.slane %v165, 0
    %167 = vmatpush.msra.mxu0 0.0
    %168 = vmatpush.msra.mxu0 0.0
    %169 = vmatpush.msra.mxu0 0.0
    %170 = vmatpush.msra.mxu0 0.0
    %171 = vmatpush.msra.mxu0 0.0
    %172 = vmatpush.msra.mxu0 0.0
    %173 = vmatpush.msra.mxu0 0.0
    %174 = vmatpush.msra.mxu0 0.0
    %175 = vmatpush.msra.mxu0 0.0
    %176 = vmatpush.msra.mxu0 0.0
    %177 = vmatpush.msra.mxu0 0.0
    %178 = vmatpush.msra.mxu0 0.0
    %179 = vmatpush.msra.mxu0 %v164
    %180 = vmatpush.msra.mxu0 %v163
    %181 = vmatpush.msra.mxu0 %v162
    %182 = vmatpush.msra.mxu0 %v161
    %183 = vmatmul.f32.gmra.mxu0 %v104
    %v184 = vpop.f32.mrf.mxu0
    %v185 = vadd.f32 %v166, %v184
    %186 = vmatmul.f32.gmra.mxu0 %v107
    %v187 = vpop.f32.mrf.mxu0
    %v188 = vadd.f32 %v166, %v187
    %189 = vdwg.mxu0
    %192 = vrot.lane.b32.xlu0 %v127, 120
    %v193 = vpop.permute.xlu0 %192
    %194 = vrot.lane.b32.xlu0 %v130, 120
    %v195 = vpop.permute.xlu0 %194
    %196 = vrot.lane.b32.xlu0 %v127, 112
    %v197 = vpop.permute.xlu0 %196
    %198 = vrot.lane.b32.xlu0 %v130, 112
    %v199 = vpop.permute.xlu0 %198
    %200 = vrot.lane.b32.xlu0 %v127, 104
    %v201 = vpop.permute.xlu0 %200
    %202 = vrot.lane.b32.xlu0 %v130, 104
    %v203 = vpop.permute.xlu0 %202
    %206 = vrot.lane.b32.xlu0 %v156, 120
    %v207 = vpop.permute.xlu0 %206
    %208 = vrot.lane.b32.xlu0 %v159, 120
    %v209 = vpop.permute.xlu0 %208
    %210 = vrot.lane.b32.xlu0 %v156, 112
    %v211 = vpop.permute.xlu0 %210
    %212 = vrot.lane.b32.xlu0 %v159, 112
    %v213 = vpop.permute.xlu0 %212
    %214 = vrot.lane.b32.xlu0 %v156, 104
    %v215 = vpop.permute.xlu0 %214
    %216 = vrot.lane.b32.xlu0 %v159, 104
    %v217 = vpop.permute.xlu0 %216
    %220 = vrot.lane.b32.xlu0 %v185, 120
    %v221 = vpop.permute.xlu0 %220
    %222 = vrot.lane.b32.xlu0 %v188, 120
    %v223 = vpop.permute.xlu0 %222
    %226 = vrot.lane.b32.xlu0 %v185, 112
    %v227 = vpop.permute.xlu0 %226
    %228 = vrot.lane.b32.xlu0 %v188, 112
    %v229 = vpop.permute.xlu0 %228
    %232 = vrot.lane.b32.xlu0 %v185, 104
    %v233 = vpop.permute.xlu0 %232
    %234 = vrot.lane.b32.xlu0 %v188, 104
    %v235 = vpop.permute.xlu0 %234
    %vm238 = vcmask 64512
    %v239 = vsel %vm238, %v127, 0
    %v241 = vsel %vm238, %v156, 0
    %243 = vmatpush.xpose.msra.mxu0 0.0
    %244 = vmatpush.xpose.msra.mxu0 0.0
    %245 = vmatpush.xpose.msra.mxu0 0.0
    %246 = vmatpush.xpose.msra.mxu0 0.0
    %247 = vmatpush.xpose.msra.mxu0 0.0
    %248 = vmatpush.xpose.msra.mxu0 0.0
    %249 = vmatpush.xpose.msra.mxu0 0.0
    %250 = vmatpush.xpose.msra.mxu0 0.0
    %251 = vmatpush.xpose.msra.mxu0 0.0
    %252 = vmatpush.xpose.msra.mxu0 0.0
    %253 = vmatpush.xpose.msra.mxu0 0.0
    %254 = vmatpush.xpose.msra.mxu0 0.0
    %255 = vmatpush.xpose.msra.mxu0 0.0
    %256 = vmatpush.xpose.msra.mxu0 0.0
    %257 = vmatpush.xpose.msra.mxu0 0.0
    %258 = vmatpush.xpose.msra.mxu0 %v241
    %259 = vmatmul.f32.gmra.mxu0 %v239
    %v260 = vpop.f32.mrf.mxu0
    %v261 = vadd.f32 %v80, %v260
    %262 = vdwg.mxu0
    %v263 = vsel %vm238, %v130, 0
    %v265 = vsel %vm238, %v159, 0
    %267 = vmatpush.xpose.msra.mxu0 0.0
    %268 = vmatpush.xpose.msra.mxu0 0.0
    %269 = vmatpush.xpose.msra.mxu0 0.0
    %270 = vmatpush.xpose.msra.mxu0 0.0
    %271 = vmatpush.xpose.msra.mxu0 0.0
    %272 = vmatpush.xpose.msra.mxu0 0.0
    %273 = vmatpush.xpose.msra.mxu0 0.0
    %274 = vmatpush.xpose.msra.mxu0 0.0
    %275 = vmatpush.xpose.msra.mxu0 0.0
    %276 = vmatpush.xpose.msra.mxu0 0.0
    %277 = vmatpush.xpose.msra.mxu0 0.0
    %278 = vmatpush.xpose.msra.mxu0 0.0
    %279 = vmatpush.xpose.msra.mxu0 0.0
    %280 = vmatpush.xpose.msra.mxu0 0.0
    %281 = vmatpush.xpose.msra.mxu0 0.0
    %282 = vmatpush.xpose.msra.mxu0 %v265
    %283 = vmatmul.f32.gmra.mxu0 %v263
    %v284 = vpop.f32.mrf.mxu0
    %v285 = vadd.f32 %v81, %v284
    %286 = vdwg.mxu0
    %v287 = vsel %vm238, %v193, 0
    %v289 = vsel %vm238, %v207, 0
    %291 = vmatpush.xpose.msra.mxu0 0.0
    %292 = vmatpush.xpose.msra.mxu0 0.0
    %293 = vmatpush.xpose.msra.mxu0 0.0
    %294 = vmatpush.xpose.msra.mxu0 0.0
    %295 = vmatpush.xpose.msra.mxu0 0.0
    %296 = vmatpush.xpose.msra.mxu0 0.0
    %297 = vmatpush.xpose.msra.mxu0 0.0
    %298 = vmatpush.xpose.msra.mxu0 0.0
    %299 = vmatpush.xpose.msra.mxu0 0.0
    %300 = vmatpush.xpose.msra.mxu0 0.0
    %301 = vmatpush.xpose.msra.mxu0 0.0
    %302 = vmatpush.xpose.msra.mxu0 0.0
    %303 = vmatpush.xpose.msra.mxu0 0.0
    %304 = vmatpush.xpose.msra.mxu0 0.0
    %305 = vmatpush.xpose.msra.mxu0 0.0
    %306 = vmatpush.xpose.msra.mxu0 %v289
    %307 = vmatmul.f32.gmra.mxu0 %v287
    %v308 = vpop.f32.mrf.mxu0
    %v309 = vadd.f32 %v82, %v308
    %310 = vdwg.mxu0
    %v311 = vsel %vm238, %v195, 0
    %v313 = vsel %vm238, %v209, 0
    %315 = vmatpush.xpose.msra.mxu0 0.0
    %316 = vmatpush.xpose.msra.mxu0 0.0
    %317 = vmatpush.xpose.msra.mxu0 0.0
    %318 = vmatpush.xpose.msra.mxu0 0.0
    %319 = vmatpush.xpose.msra.mxu0 0.0
    %320 = vmatpush.xpose.msra.mxu0 0.0
    %321 = vmatpush.xpose.msra.mxu0 0.0
    %322 = vmatpush.xpose.msra.mxu0 0.0
    %323 = vmatpush.xpose.msra.mxu0 0.0
    %324 = vmatpush.xpose.msra.mxu0 0.0
    %325 = vmatpush.xpose.msra.mxu0 0.0
    %326 = vmatpush.xpose.msra.mxu0 0.0
    %327 = vmatpush.xpose.msra.mxu0 0.0
    %328 = vmatpush.xpose.msra.mxu0 0.0
    %329 = vmatpush.xpose.msra.mxu0 0.0
    %330 = vmatpush.xpose.msra.mxu0 %v313
    %331 = vmatmul.f32.gmra.mxu0 %v311
    %v332 = vpop.f32.mrf.mxu0
    %v333 = vadd.f32 %v83, %v332
    %334 = vdwg.mxu0
    %v335 = vsel %vm238, %v197, 0
    %v337 = vsel %vm238, %v211, 0
    %339 = vmatpush.xpose.msra.mxu0 0.0
    %340 = vmatpush.xpose.msra.mxu0 0.0
    %341 = vmatpush.xpose.msra.mxu0 0.0
    %342 = vmatpush.xpose.msra.mxu0 0.0
    %343 = vmatpush.xpose.msra.mxu0 0.0
    %344 = vmatpush.xpose.msra.mxu0 0.0
    %345 = vmatpush.xpose.msra.mxu0 0.0
    %346 = vmatpush.xpose.msra.mxu0 0.0
    %347 = vmatpush.xpose.msra.mxu0 0.0
    %348 = vmatpush.xpose.msra.mxu0 0.0
    %349 = vmatpush.xpose.msra.mxu0 0.0
    %350 = vmatpush.xpose.msra.mxu0 0.0
    %351 = vmatpush.xpose.msra.mxu0 0.0
    %352 = vmatpush.xpose.msra.mxu0 0.0
    %353 = vmatpush.xpose.msra.mxu0 0.0
    %354 = vmatpush.xpose.msra.mxu0 %v337
    %355 = vmatmul.f32.gmra.mxu0 %v335
    %v356 = vpop.f32.mrf.mxu0
    %v357 = vadd.f32 %v84, %v356
    %358 = vdwg.mxu0
    %v359 = vsel %vm238, %v199, 0
    %v361 = vsel %vm238, %v213, 0
    %363 = vmatpush.xpose.msra.mxu0 0.0
    %364 = vmatpush.xpose.msra.mxu0 0.0
    %365 = vmatpush.xpose.msra.mxu0 0.0
    %366 = vmatpush.xpose.msra.mxu0 0.0
    %367 = vmatpush.xpose.msra.mxu0 0.0
    %368 = vmatpush.xpose.msra.mxu0 0.0
    %369 = vmatpush.xpose.msra.mxu0 0.0
    %370 = vmatpush.xpose.msra.mxu0 0.0
    %371 = vmatpush.xpose.msra.mxu0 0.0
    %372 = vmatpush.xpose.msra.mxu0 0.0
    %373 = vmatpush.xpose.msra.mxu0 0.0
    %374 = vmatpush.xpose.msra.mxu0 0.0
    %375 = vmatpush.xpose.msra.mxu0 0.0
    %376 = vmatpush.xpose.msra.mxu0 0.0
    %377 = vmatpush.xpose.msra.mxu0 0.0
    %378 = vmatpush.xpose.msra.mxu0 %v361
    %379 = vmatmul.f32.gmra.mxu0 %v359
    %v380 = vpop.f32.mrf.mxu0
    %v381 = vadd.f32 %v85, %v380
    %382 = vdwg.mxu0
    %v383 = vsel %vm238, %v201, 0
    %v385 = vsel %vm238, %v215, 0
    %387 = vmatpush.xpose.msra.mxu0 0.0
    %388 = vmatpush.xpose.msra.mxu0 0.0
    %389 = vmatpush.xpose.msra.mxu0 0.0
    %390 = vmatpush.xpose.msra.mxu0 0.0
    %391 = vmatpush.xpose.msra.mxu0 0.0
    %392 = vmatpush.xpose.msra.mxu0 0.0
    %393 = vmatpush.xpose.msra.mxu0 0.0
    %394 = vmatpush.xpose.msra.mxu0 0.0
    %395 = vmatpush.xpose.msra.mxu0 0.0
    %396 = vmatpush.xpose.msra.mxu0 0.0
    %397 = vmatpush.xpose.msra.mxu0 0.0
    %398 = vmatpush.xpose.msra.mxu0 0.0
    %399 = vmatpush.xpose.msra.mxu0 0.0
    %400 = vmatpush.xpose.msra.mxu0 0.0
    %401 = vmatpush.xpose.msra.mxu0 0.0
    %402 = vmatpush.xpose.msra.mxu0 %v385
    %403 = vmatmul.f32.gmra.mxu0 %v383
    %v404 = vpop.f32.mrf.mxu0
    %v405 = vadd.f32 %v86, %v404
    %406 = vdwg.mxu0
    %v407 = vsel %vm238, %v203, 0
    %v409 = vsel %vm238, %v217, 0
    %411 = vmatpush.xpose.msra.mxu0 0.0
    %412 = vmatpush.xpose.msra.mxu0 0.0
    %413 = vmatpush.xpose.msra.mxu0 0.0
    %414 = vmatpush.xpose.msra.mxu0 0.0
    %415 = vmatpush.xpose.msra.mxu0 0.0
    %416 = vmatpush.xpose.msra.mxu0 0.0
    %417 = vmatpush.xpose.msra.mxu0 0.0
    %418 = vmatpush.xpose.msra.mxu0 0.0
    %419 = vmatpush.xpose.msra.mxu0 0.0
    %420 = vmatpush.xpose.msra.mxu0 0.0
    %421 = vmatpush.xpose.msra.mxu0 0.0
    %422 = vmatpush.xpose.msra.mxu0 0.0
    %423 = vmatpush.xpose.msra.mxu0 0.0
    %424 = vmatpush.xpose.msra.mxu0 0.0
    %425 = vmatpush.xpose.msra.mxu0 0.0
    %426 = vmatpush.xpose.msra.mxu0 %v409
    %427 = vmatmul.f32.gmra.mxu0 %v407
    %v428 = vpop.f32.mrf.mxu0
    %v429 = vadd.f32 %v87, %v428
    %430 = vdwg.mxu0
    %v431 = vsel %vm238, %v261, -inf
    %432 = vmax.xlane.f32.xlu0 %v431
    %v433 = vpop.xlane.xlu0 %432
    %v434 = vsel %vm238, %v285, -inf
    %435 = vmax.xlane.f32.xlu0 %v434
    %v436 = vpop.xlane.xlu0 %435
    %v437 = vsel %vm238, %v309, -inf
    %438 = vmax.xlane.f32.xlu0 %v437
    %v439 = vpop.xlane.xlu0 %438
    %v440 = vsel %vm238, %v333, -inf
    %441 = vmax.xlane.f32.xlu0 %v440
    %v442 = vpop.xlane.xlu0 %441
    %v443 = vsel %vm238, %v357, -inf
    %444 = vmax.xlane.f32.xlu0 %v443
    %v445 = vpop.xlane.xlu0 %444
    %v446 = vsel %vm238, %v381, -inf
    %447 = vmax.xlane.f32.xlu0 %v446
    %v448 = vpop.xlane.xlu0 %447
    %v449 = vsel %vm238, %v405, -inf
    %450 = vmax.xlane.f32.xlu0 %v449
    %v451 = vpop.xlane.xlu0 %450
    %v452 = vsel %vm238, %v429, -inf
    %453 = vmax.xlane.f32.xlu0 %v452
    %v454 = vpop.xlane.xlu0 %453
    %v455 = vsub.f32 %v261, %v433
    %v456 = vsub.f32 %v285, %v436
    %v457 = vsub.f32 %v309, %v439
    %v458 = vsub.f32 %v333, %v442
    %v459 = vsub.f32 %v357, %v445
    %v460 = vsub.f32 %v381, %v448
    %v461 = vsub.f32 %v405, %v451
    %v462 = vsub.f32 %v429, %v454
    %v463 = vmul.f32 %v455, 1.442695
    %v464 = vpow.pop %v463
    %v465 = vmul.f32 %v456, 1.442695
    %v466 = vpow.pop %v465
    %v467 = vmul.f32 %v457, 1.442695
    %v468 = vpow.pop %v467
    %v469 = vmul.f32 %v458, 1.442695
    %v470 = vpow.pop %v469
    %v471 = vmul.f32 %v459, 1.442695
    %v472 = vpow.pop %v471
    %v473 = vmul.f32 %v460, 1.442695
    %v474 = vpow.pop %v473
    %v475 = vmul.f32 %v461, 1.442695
    %v476 = vpow.pop %v475
    %v477 = vmul.f32 %v462, 1.442695
    %v478 = vpow.pop %v477
    %v479 = vsel %vm238, %v464, 0.0
    %480 = vadd.xlane.f32.xlu0 %v479
    %v481 = vpop.xlane.xlu0 %480
    %v482 = vsel %vm238, %v466, 0.0
    %483 = vadd.xlane.f32.xlu0 %v482
    %v484 = vpop.xlane.xlu0 %483
    %v485 = vsel %vm238, %v468, 0.0
    %486 = vadd.xlane.f32.xlu0 %v485
    %v487 = vpop.xlane.xlu0 %486
    %v488 = vsel %vm238, %v470, 0.0
    %489 = vadd.xlane.f32.xlu0 %v488
    %v490 = vpop.xlane.xlu0 %489
    %v491 = vsel %vm238, %v472, 0.0
    %492 = vadd.xlane.f32.xlu0 %v491
    %v493 = vpop.xlane.xlu0 %492
    %v494 = vsel %vm238, %v474, 0.0
    %495 = vadd.xlane.f32.xlu0 %v494
    %v496 = vpop.xlane.xlu0 %495
    %v497 = vsel %vm238, %v476, 0.0
    %498 = vadd.xlane.f32.xlu0 %v497
    %v499 = vpop.xlane.xlu0 %498
    %v500 = vsel %vm238, %v478, 0.0
    %501 = vadd.xlane.f32.xlu0 %v500
    %v502 = vpop.xlane.xlu0 %501
    %v503 = vrcp.pop %v481
    %v504 = vrcp.pop %v484
    %v505 = vrcp.pop %v487
    %v506 = vrcp.pop %v490
    %v507 = vrcp.pop %v493
    %v508 = vrcp.pop %v496
    %v509 = vrcp.pop %v499
    %v510 = vrcp.pop %v502
    %v511 = vmul.f32 %v464, %v503
    %v512 = vmul.f32 %v466, %v504
    %v513 = vmul.f32 %v468, %v505
    %v514 = vmul.f32 %v470, %v506
    %v515 = vmul.f32 %v472, %v507
    %v516 = vmul.f32 %v474, %v508
    %v517 = vmul.f32 %v476, %v509
    %v518 = vmul.f32 %v478, %v510
    %v520 = vsel %vm238, %v511, 0
    %522 = vmatpush.msra.mxu0 0.0
    %523 = vmatpush.msra.mxu0 0.0
    %524 = vmatpush.msra.mxu0 0.0
    %525 = vmatpush.msra.mxu0 0.0
    %526 = vmatpush.msra.mxu0 0.0
    %527 = vmatpush.msra.mxu0 0.0
    %528 = vmatpush.msra.mxu0 0.0
    %529 = vmatpush.msra.mxu0 0.0
    %530 = vmatpush.msra.mxu0 0.0
    %531 = vmatpush.msra.mxu0 0.0
    %532 = vmatpush.msra.mxu0 0.0
    %533 = vmatpush.msra.mxu0 0.0
    %534 = vmatpush.msra.mxu0 0.0
    %535 = vmatpush.msra.mxu0 0.0
    %536 = vmatpush.msra.mxu0 0.0
    %537 = vmatpush.msra.mxu0 %v185
    %538 = vmatmul.f32.gmra.mxu0 %v520
    %v539 = vpop.f32.mrf.mxu0
    %v540 = vadd.f32 0.0, %v539
    %541 = vdwg.mxu0
    %v543 = vsel %vm238, %v512, 0
    %545 = vmatpush.msra.mxu0 0.0
    %546 = vmatpush.msra.mxu0 0.0
    %547 = vmatpush.msra.mxu0 0.0
    %548 = vmatpush.msra.mxu0 0.0
    %549 = vmatpush.msra.mxu0 0.0
    %550 = vmatpush.msra.mxu0 0.0
    %551 = vmatpush.msra.mxu0 0.0
    %552 = vmatpush.msra.mxu0 0.0
    %553 = vmatpush.msra.mxu0 0.0
    %554 = vmatpush.msra.mxu0 0.0
    %555 = vmatpush.msra.mxu0 0.0
    %556 = vmatpush.msra.mxu0 0.0
    %557 = vmatpush.msra.mxu0 0.0
    %558 = vmatpush.msra.mxu0 0.0
    %559 = vmatpush.msra.mxu0 0.0
    %560 = vmatpush.msra.mxu0 %v188
    %561 = vmatmul.f32.gmra.mxu0 %v543
    %v562 = vpop.f32.mrf.mxu0
    %v563 = vadd.f32 0.0, %v562
    %564 = vdwg.mxu0
    %v566 = vsel %vm238, %v513, 0
    %568 = vmatpush.msra.mxu0 0.0
    %569 = vmatpush.msra.mxu0 0.0
    %570 = vmatpush.msra.mxu0 0.0
    %571 = vmatpush.msra.mxu0 0.0
    %572 = vmatpush.msra.mxu0 0.0
    %573 = vmatpush.msra.mxu0 0.0
    %574 = vmatpush.msra.mxu0 0.0
    %575 = vmatpush.msra.mxu0 0.0
    %576 = vmatpush.msra.mxu0 0.0
    %577 = vmatpush.msra.mxu0 0.0
    %578 = vmatpush.msra.mxu0 0.0
    %579 = vmatpush.msra.mxu0 0.0
    %580 = vmatpush.msra.mxu0 0.0
    %581 = vmatpush.msra.mxu0 0.0
    %582 = vmatpush.msra.mxu0 0.0
    %583 = vmatpush.msra.mxu0 %v221
    %584 = vmatmul.f32.gmra.mxu0 %v566
    %v585 = vpop.f32.mrf.mxu0
    %v586 = vadd.f32 0.0, %v585
    %587 = vdwg.mxu0
    %v589 = vsel %vm238, %v514, 0
    %591 = vmatpush.msra.mxu0 0.0
    %592 = vmatpush.msra.mxu0 0.0
    %593 = vmatpush.msra.mxu0 0.0
    %594 = vmatpush.msra.mxu0 0.0
    %595 = vmatpush.msra.mxu0 0.0
    %596 = vmatpush.msra.mxu0 0.0
    %597 = vmatpush.msra.mxu0 0.0
    %598 = vmatpush.msra.mxu0 0.0
    %599 = vmatpush.msra.mxu0 0.0
    %600 = vmatpush.msra.mxu0 0.0
    %601 = vmatpush.msra.mxu0 0.0
    %602 = vmatpush.msra.mxu0 0.0
    %603 = vmatpush.msra.mxu0 0.0
    %604 = vmatpush.msra.mxu0 0.0
    %605 = vmatpush.msra.mxu0 0.0
    %606 = vmatpush.msra.mxu0 %v223
    %607 = vmatmul.f32.gmra.mxu0 %v589
    %v608 = vpop.f32.mrf.mxu0
    %v609 = vadd.f32 0.0, %v608
    %610 = vdwg.mxu0
    %v612 = vsel %vm238, %v515, 0
    %614 = vmatpush.msra.mxu0 0.0
    %615 = vmatpush.msra.mxu0 0.0
    %616 = vmatpush.msra.mxu0 0.0
    %617 = vmatpush.msra.mxu0 0.0
    %618 = vmatpush.msra.mxu0 0.0
    %619 = vmatpush.msra.mxu0 0.0
    %620 = vmatpush.msra.mxu0 0.0
    %621 = vmatpush.msra.mxu0 0.0
    %622 = vmatpush.msra.mxu0 0.0
    %623 = vmatpush.msra.mxu0 0.0
    %624 = vmatpush.msra.mxu0 0.0
    %625 = vmatpush.msra.mxu0 0.0
    %626 = vmatpush.msra.mxu0 0.0
    %627 = vmatpush.msra.mxu0 0.0
    %628 = vmatpush.msra.mxu0 0.0
    %629 = vmatpush.msra.mxu0 %v227
    %630 = vmatmul.f32.gmra.mxu0 %v612
    %v631 = vpop.f32.mrf.mxu0
    %v632 = vadd.f32 0.0, %v631
    %633 = vdwg.mxu0
    %v635 = vsel %vm238, %v516, 0
    %637 = vmatpush.msra.mxu0 0.0
    %638 = vmatpush.msra.mxu0 0.0
    %639 = vmatpush.msra.mxu0 0.0
    %640 = vmatpush.msra.mxu0 0.0
    %641 = vmatpush.msra.mxu0 0.0
    %642 = vmatpush.msra.mxu0 0.0
    %643 = vmatpush.msra.mxu0 0.0
    %644 = vmatpush.msra.mxu0 0.0
    %645 = vmatpush.msra.mxu0 0.0
    %646 = vmatpush.msra.mxu0 0.0
    %647 = vmatpush.msra.mxu0 0.0
    %648 = vmatpush.msra.mxu0 0.0
    %649 = vmatpush.msra.mxu0 0.0
    %650 = vmatpush.msra.mxu0 0.0
    %651 = vmatpush.msra.mxu0 0.0
    %652 = vmatpush.msra.mxu0 %v229
    %653 = vmatmul.f32.gmra.mxu0 %v635
    %v654 = vpop.f32.mrf.mxu0
    %v655 = vadd.f32 0.0, %v654
    %656 = vdwg.mxu0
    %v658 = vsel %vm238, %v517, 0
    %660 = vmatpush.msra.mxu0 0.0
    %661 = vmatpush.msra.mxu0 0.0
    %662 = vmatpush.msra.mxu0 0.0
    %663 = vmatpush.msra.mxu0 0.0
    %664 = vmatpush.msra.mxu0 0.0
    %665 = vmatpush.msra.mxu0 0.0
    %666 = vmatpush.msra.mxu0 0.0
    %667 = vmatpush.msra.mxu0 0.0
    %668 = vmatpush.msra.mxu0 0.0
    %669 = vmatpush.msra.mxu0 0.0
    %670 = vmatpush.msra.mxu0 0.0
    %671 = vmatpush.msra.mxu0 0.0
    %672 = vmatpush.msra.mxu0 0.0
    %673 = vmatpush.msra.mxu0 0.0
    %674 = vmatpush.msra.mxu0 0.0
    %675 = vmatpush.msra.mxu0 %v233
    %676 = vmatmul.f32.gmra.mxu0 %v658
    %v677 = vpop.f32.mrf.mxu0
    %v678 = vadd.f32 0.0, %v677
    %679 = vdwg.mxu0
    %v681 = vsel %vm238, %v518, 0
    %683 = vmatpush.msra.mxu0 0.0
    %684 = vmatpush.msra.mxu0 0.0
    %685 = vmatpush.msra.mxu0 0.0
    %686 = vmatpush.msra.mxu0 0.0
    %687 = vmatpush.msra.mxu0 0.0
    %688 = vmatpush.msra.mxu0 0.0
    %689 = vmatpush.msra.mxu0 0.0
    %690 = vmatpush.msra.mxu0 0.0
    %691 = vmatpush.msra.mxu0 0.0
    %692 = vmatpush.msra.mxu0 0.0
    %693 = vmatpush.msra.mxu0 0.0
    %694 = vmatpush.msra.mxu0 0.0
    %695 = vmatpush.msra.mxu0 0.0
    %696 = vmatpush.msra.mxu0 0.0
    %697 = vmatpush.msra.mxu0 0.0
    %698 = vmatpush.msra.mxu0 %v235
    %699 = vmatmul.f32.gmra.mxu0 %v681
    %v700 = vpop.f32.mrf.mxu0
    %v701 = vadd.f32 0.0, %v700
    %702 = vdwg.mxu0
    %705 = vrot.lane.b32.xlu0 %v586, 8
    %v706 = vpop.permute.xlu0 %705
    %707 = vrot.lane.b32.xlu0 %v609, 8
    %v708 = vpop.permute.xlu0 %707
    %713 = vrot.lane.b32.xlu0 %v632, 16
    %v714 = vpop.permute.xlu0 %713
    %715 = vrot.lane.b32.xlu0 %v655, 16
    %v716 = vpop.permute.xlu0 %715
    %721 = vrot.lane.b32.xlu0 %v678, 24
    %v722 = vpop.permute.xlu0 %721
    %723 = vrot.lane.b32.xlu0 %v701, 24
    %v724 = vpop.permute.xlu0 %723
    %v727 = vsel %vm238, %v540, %v706
    %v728 = vsel %vm238, %v563, %v708
    %vm729 = vcmask 130048
    %v730 = vsel %vm729, %v727, %v714
    %v731 = vsel %vm729, %v728, %v716
    %vm732 = vcmask 195584
    %v733 = vsel %vm732, %v730, %v722
    %v734 = vsel %vm732, %v731, %v724
    %v735 = vld [vmem:[#allocation7 + $0x60] sm:$0xff]
    %v736 = vld [vmem:[#allocation7 + $0x68] sm:$0xff]
    %v737 = vld [vmem:[#allocation7 + $0x70] sm:$0xff]
    %v738 = vld [vmem:[#allocation7 + $0x78] sm:$0xff]
    %v739 = vld [vmem:[#allocation7 + $0xe3] sm:$0x1]
    %v740 = vperm.slane %v739, 0
    %v742 = vsel %vm102, %v733, 0
    %v745 = vsel %vm102, %v734, 0
    %747 = vmatpush.msra.mxu0 0.0
    %748 = vmatpush.msra.mxu0 0.0
    %749 = vmatpush.msra.mxu0 0.0
    %750 = vmatpush.msra.mxu0 0.0
    %751 = vmatpush.msra.mxu0 0.0
    %752 = vmatpush.msra.mxu0 0.0
    %753 = vmatpush.msra.mxu0 0.0
    %754 = vmatpush.msra.mxu0 0.0
    %755 = vmatpush.msra.mxu0 0.0
    %756 = vmatpush.msra.mxu0 0.0
    %757 = vmatpush.msra.mxu0 0.0
    %758 = vmatpush.msra.mxu0 0.0
    %759 = vmatpush.msra.mxu0 %v738
    %760 = vmatpush.msra.mxu0 %v737
    %761 = vmatpush.msra.mxu0 %v736
    %762 = vmatpush.msra.mxu0 %v735
    %763 = vmatmul.f32.gmra.mxu0 %v742
    %v764 = vpop.f32.mrf.mxu0
    %v765 = vadd.f32 %v740, %v764
    %766 = vmatmul.f32.gmra.mxu0 %v745
    %v767 = vpop.f32.mrf.mxu0
    %v768 = vadd.f32 %v740, %v767
    %769 = vdwg.mxu0
    %v770 = vadd.f32 %v62, %v765
    %v771 = vadd.f32 %v63, %v768
    %v772 = vld [vmem:[#allocation7 + $0xe4] sm:$0x1]
    %v773 = vld [vmem:[#allocation7 + $0xe5] sm:$0x1]
    %v774 = vsel %vm102, %v770, 0.0
    %775 = vadd.xlane.f32.xlu0 %v774
    %v776 = vpop.xlane.xlu0 %775
    %v777 = vsel %vm102, %v771, 0.0
    %778 = vadd.xlane.f32.xlu0 %v777
    %v779 = vpop.xlane.xlu0 %778
    %v780 = vrcp.pop 32.0
    %v781 = vmul.f32 32.0, %v780
    %v782 = vsub.f32 1.0, %v781
    %v783 = vmul.f32 %v780, %v782
    %v784 = vadd.f32 %v780, %v783
    %vm785 = vweird.f32 %v780
    %v786 = vsel %vm785, %v780, %v784
    %v787 = vmul.f32 %v776, %v786
    %v788 = vmul.f32 %v779, %v786
    %v789 = vsub.f32 %v770, %v787
    %v790 = vsub.f32 %v771, %v788
    %v791 = vmul.f32 %v789, %v789
    %v792 = vmul.f32 %v790, %v790
    %v793 = vsel %vm102, %v791, 0.0
    %794 = vadd.xlane.f32.xlu0 %v793
    %v795 = vpop.xlane.xlu0 %794
    %v796 = vsel %vm102, %v792, 0.0
    %797 = vadd.xlane.f32.xlu0 %v796
    %v798 = vpop.xlane.xlu0 %797
    %v799 = vmul.f32 %v795, %v786
    %v800 = vmul.f32 %v798, %v786
    %v801 = vadd.f32 %v799, 1e-12
    %v802 = vadd.f32 %v800, 1e-12
    %v803 = vrsqrt.pop %v801
    %v804 = vmul.f32 %v803, %v801
    %v805 = vmul.f32 %v804, %v803
    %v806 = vmul.f32 0.5, %v805
    %v807 = vsub.f32 1.5, %v806
    %v808 = vmul.f32 %v803, %v807
    %vm809 = vweird.f32 %v801
    %vm810 = vweird.f32 %v803
    %vm811 = vmor %vm809, %vm810
    %v812 = vsel %vm811, %v803, %v808
    %v813 = vrsqrt.pop %v802
    %v814 = vmul.f32 %v813, %v802
    %v815 = vmul.f32 %v814, %v813
    %v816 = vmul.f32 0.5, %v815
    %v817 = vsub.f32 1.5, %v816
    %v818 = vmul.f32 %v813, %v817
    %vm819 = vweird.f32 %v802
    %vm820 = vweird.f32 %v813
    %vm821 = vmor %vm819, %vm820
    %v822 = vsel %vm821, %v813, %v818
    %v823 = vmul.f32 %v789, %v812
    %v824 = vmul.f32 %v790, %v822
    %v825 = vperm.slane %v772, 0
    %v826 = vmul.f32 %v823, %v825
    %v827 = vmul.f32 %v824, %v825
    %v828 = vperm.slane %v773, 0
    %v829 = vadd.f32 %v826, %v828
    %v830 = vadd.f32 %v827, %v828
    %v831 = vld [vmem:[#allocation7 + $0x80] sm:$0xff]
    %v832 = vld [vmem:[#allocation7 + $0x88] sm:$0xff]
    %v833 = vld [vmem:[#allocation7 + $0x90] sm:$0xff]
    %v834 = vld [vmem:[#allocation7 + $0x98] sm:$0xff]
    %v835 = vld [vmem:[#allocation7 + $0xe6] sm:$0x1]
    %v836 = vperm.slane %v835, 0
    %v838 = vsel %vm102, %v829, 0
    %v841 = vsel %vm102, %v830, 0
    %843 = vmatpush.msra.mxu0 0.0
    %844 = vmatpush.msra.mxu0 0.0
    %845 = vmatpush.msra.mxu0 0.0
    %846 = vmatpush.msra.mxu0 0.0
    %847 = vmatpush.msra.mxu0 0.0
    %848 = vmatpush.msra.mxu0 0.0
    %849 = vmatpush.msra.mxu0 0.0
    %850 = vmatpush.msra.mxu0 0.0
    %851 = vmatpush.msra.mxu0 0.0
    %852 = vmatpush.msra.mxu0 0.0
    %853 = vmatpush.msra.mxu0 0.0
    %854 = vmatpush.msra.mxu0 0.0
    %855 = vmatpush.msra.mxu0 %v834
    %856 = vmatpush.msra.mxu0 %v833
    %857 = vmatpush.msra.mxu0 %v832
    %858 = vmatpush.msra.mxu0 %v831
    %859 = vmatmul.f32.gmra.mxu0 %v838
    %v860 = vpop.f32.mrf.mxu0
    %v861 = vadd.f32 %v836, %v860
    %862 = vmatmul.f32.gmra.mxu0 %v841
    %v863 = vpop.f32.mrf.mxu0
    %v864 = vadd.f32 %v836, %v863
    %865 = vdwg.mxu0
    %v866 = vmul.f32 %v861, 0.5
    %v867 = vmul.f32 %v864, 0.5
    %v868 = vmul.f32 %v861, 0.044715
    %v869 = vmul.f32 %v864, 0.044715
    %v870 = vmul.f32 %v868, %v861
    %v871 = vmul.f32 %v869, %v864
    %v872 = vmul.f32 %v870, %v861
    %v873 = vmul.f32 %v871, %v864
    %v874 = vadd.f32 %v861, %v872
    %v875 = vadd.f32 %v864, %v873
    %v876 = vmul.f32 %v874, 0.7978846
    %v877 = vmul.f32 %v875, 0.7978846
    %v878 = vtanh.pop %v876
    %v879 = vtanh.pop %v877
    %v880 = vadd.f32 %v878, 1.0
    %v881 = vadd.f32 %v879, 1.0
    %v882 = vmul.f32 %v866, %v880
    %v883 = vmul.f32 %v867, %v881
    %v884 = vld [vmem:[#allocation7 + $0xa0] sm:$0xff]
    %v885 = vld [vmem:[#allocation7 + $0xa8] sm:$0xff]
    %v886 = vld [vmem:[#allocation7 + $0xb0] sm:$0xff]
    %v887 = vld [vmem:[#allocation7 + $0xb8] sm:$0xff]
    %v888 = vld [vmem:[#allocation7 + $0xc0] sm:$0xff]
    %v889 = vld [vmem:[#allocation7 + $0xc8] sm:$0xff]
    %v890 = vld [vmem:[#allocation7 + $0xd0] sm:$0xff]
    %v891 = vld [vmem:[#allocation7 + $0xd8] sm:$0xff]
    %v892 = vld [vmem:[#allocation7 + $0xe7] sm:$0x1]
    %v893 = vperm.slane %v892, 0
    %vm894 = vcmask 523264
    %v896 = vsel %vm894, %v882, 0
    %v899 = vsel %vm894, %v883, 0
    %901 = vmatpush.msra.mxu0 0.0
    %902 = vmatpush.msra.mxu0 0.0
    %903 = vmatpush.msra.mxu0 0.0
    %904 = vmatpush.msra.mxu0 0.0
    %905 = vmatpush.msra.mxu0 0.0
    %906 = vmatpush.msra.mxu0 0.0
    %907 = vmatpush.msra.mxu0 0.0
    %908 = vmatpush.msra.mxu0 0.0
    %909 = vmatpush.msra.mxu0 %v891
    %910 = vmatpush.msra.mxu0 %v890
    %911 = vmatpush.msra.mxu0 %v889
    %912 = vmatpush.msra.mxu0 %v888
    %913 = vmatpush.msra.mxu0 %v887
    %914 = vmatpush.msra.mxu0 %v886
    %915 = vmatpush.msra.mxu0 %v885
    %916 = vmatpush.msra.mxu0 %v884
    %917 = vmatmul.f32.gmra.mxu0 %v896
    %v918 = vpop.f32.mrf.mxu0
    %v919 = vadd.f32 %v893, %v918
    %920 = vmatmul.f32.gmra.mxu0 %v899
    %v921 = vpop.f32.mrf.mxu0
    %v922 = vadd.f32 %v893, %v921
    %923 = vdwg.mxu0
    %v924 = vadd.f32 %v829, %v919
    %v925 = vadd.f32 %v830, %v922
    %v926 = vld [vmem:[#allocation7 + $0xe8] sm:$0x1]
    %v927 = vld [vmem:[#allocation7 + $0xe9] sm:$0x1]
    %v928 = vsel %vm102, %v924, 0.0
    %929 = vadd.xlane.f32.xlu0 %v928
    %v930 = vpop.xlane.xlu0 %929
    %v931 = vsel %vm102, %v925, 0.0
    %932 = vadd.xlane.f32.xlu0 %v931
    %v933 = vpop.xlane.xlu0 %932
    %v934 = vmul.f32 %v930, %v786
    %v935 = vmul.f32 %v933, %v786
    %v936 = vsub.f32 %v924, %v934
    %v937 = vsub.f32 %v925, %v935
    %v938 = vmul.f32 %v936, %v936
    %v939 = vmul.f32 %v937, %v937
    %v940 = vsel %vm102, %v938, 0.0
    %941 = vadd.xlane.f32.xlu0 %v940
    %v942 = vpop.xlane.xlu0 %941
    %v943 = vsel %vm102, %v939, 0.0
    %944 = vadd.xlane.f32.xlu0 %v943
    %v945 = vpop.xlane.xlu0 %944
    %v946 = vmul.f32 %v942, %v786
    %v947 = vmul.f32 %v945, %v786
    %v948 = vadd.f32 %v946, 1e-12
    %v949 = vadd.f32 %v947, 1e-12
    %v950 = vrsqrt.pop %v948
    %v951 = vmul.f32 %v950, %v948
    %v952 = vmul.f32 %v951, %v950
    %v953 = vmul.f32 0.5, %v952
    %v954 = vsub.f32 1.5, %v953
    %v955 = vmul.f32 %v950, %v954
    %vm956 = vweird.f32 %v948
    %vm957 = vweird.f32 %v950
    %vm958 = vmor %vm956, %vm957
    %v959 = vsel %vm958, %v950, %v955
    %v960 = vrsqrt.pop %v949
    %v961 = vmul.f32 %v960, %v949
    %v962 = vmul.f32 %v961, %v960
    %v963 = vmul.f32 0.5, %v962
    %v964 = vsub.f32 1.5, %v963
    %v965 = vmul.f32 %v960, %v964
    %vm966 = vweird.f32 %v949
    %vm967 = vweird.f32 %v960
    %vm968 = vmor %vm966, %vm967
    %v969 = vsel %vm968, %v960, %v965
    %v970 = vmul.f32 %v936, %v959
    %v971 = vmul.f32 %v937, %v969
    %v972 = vperm.slane %v926, 0
    %v973 = vmul.f32 %v970, %v972
    %v974 = vmul.f32 %v971, %v972
    %v975 = vperm.slane %v927, 0
    %v976 = vadd.f32 %v973, %v975
    %v977 = vadd.f32 %v974, %v975
    %v978 = vld [vmem:[#allocation7 + $0xf0] sm:$0xff]
    %v979 = vld [vmem:[#allocation7 + $0xf8] sm:$0xff]
    %v980 = vld [vmem:[#allocation7 + $0x100] sm:$0xff]
    %v981 = vld [vmem:[#allocation7 + $0x108] sm:$0xff]
    %v982 = vld [vmem:[#allocation7 + $0x1d0] sm:$0x1]
    %v983 = vperm.slane %v982, 0
    %v985 = vsel %vm102, %v976, 0
    %v988 = vsel %vm102, %v977, 0
    %990 = vmatpush.msra.mxu0 0.0
    %991 = vmatpush.msra.mxu0 0.0
    %992 = vmatpush.msra.mxu0 0.0
    %993 = vmatpush.msra.mxu0 0.0
    %994 = vmatpush.msra.mxu0 0.0
    %995 = vmatpush.msra.mxu0 0.0
    %996 = vmatpush.msra.mxu0 0.0
    %997 = vmatpush.msra.mxu0 0.0
    %998 = vmatpush.msra.mxu0 0.0
    %999 = vmatpush.msra.mxu0 0.0
    %1000 = vmatpush.msra.mxu0 0.0
    %1001 = vmatpush.msra.mxu0 0.0
    %1002 = vmatpush.msra.mxu0 %v981
    %1003 = vmatpush.msra.mxu0 %v980
    %1004 = vmatpush.msra.mxu0 %v979
    %1005 = vmatpush.msra.mxu0 %v978
    %1006 = vmatmul.f32.gmra.mxu0 %v985
    %v1007 = vpop.f32.mrf.mxu0
    %v1008 = vadd.f32 %v983, %v1007
    %1009 = vmatmul.f32.gmra.mxu0 %v988
    %v1010 = vpop.f32.mrf.mxu0
    %v1011 = vadd.f32 %v983, %v1010
    %1012 = vdwg.mxu0
    %v1013 = vld [vmem:[#allocation7 + $0x110] sm:$0xff]
    %v1014 = vld [vmem:[#allocation7 + $0x118] sm:$0xff]
    %v1015 = vld [vmem:[#allocation7 + $0x120] sm:$0xff]
    %v1016 = vld [vmem:[#allocation7 + $0x128] sm:$0xff]
    %v1017 = vld [vmem:[#allocation7 + $0x1d1] sm:$0x1]
    %v1018 = vperm.slane %v1017, 0
    %1019 = vmatpush.msra.mxu0 0.0
    %1020 = vmatpush.msra.mxu0 0.0
    %1021 = vmatpush.msra.mxu0 0.0
    %1022 = vmatpush.msra.mxu0 0.0
    %1023 = vmatpush.msra.mxu0 0.0
    %1024 = vmatpush.msra.mxu0 0.0
    %1025 = vmatpush.msra.mxu0 0.0
    %1026 = vmatpush.msra.mxu0 0.0
    %1027 = vmatpush.msra.mxu0 0.0
    %1028 = vmatpush.msra.mxu0 0.0
    %1029 = vmatpush.msra.mxu0 0.0
    %1030 = vmatpush.msra.mxu0 0.0
    %1031 = vmatpush.msra.mxu0 %v1016
    %1032 = vmatpush.msra.mxu0 %v1015
    %1033 = vmatpush.msra.mxu0 %v1014
    %1034 = vmatpush.msra.mxu0 %v1013
    %1035 = vmatmul.f32.gmra.mxu0 %v985
    %v1036 = vpop.f32.mrf.mxu0
    %v1037 = vadd.f32 %v1018, %v1036
    %1038 = vmatmul.f32.gmra.mxu0 %v988
    %v1039 = vpop.f32.mrf.mxu0
    %v1040 = vadd.f32 %v1018, %v1039
    %1041 = vdwg.mxu0
    %v1042 = vld [vmem:[#allocation7 + $0x130] sm:$0xff]
    %v1043 = vld [vmem:[#allocation7 + $0x138] sm:$0xff]
    %v1044 = vld [vmem:[#allocation7 + $0x140] sm:$0xff]
    %v1045 = vld [vmem:[#allocation7 + $0x148] sm:$0xff]
    %v1046 = vld [vmem:[#allocation7 + $0x1d2] sm:$0x1]
    %v1047 = vperm.slane %v1046, 0
    %1048 = vmatpush.msra.mxu0 0.0
    %1049 = vmatpush.msra.mxu0 0.0
    %1050 = vmatpush.msra.mxu0 0.0
    %1051 = vmatpush.msra.mxu0 0.0
    %1052 = vmatpush.msra.mxu0 0.0
    %1053 = vmatpush.msra.mxu0 0.0
    %1054 = vmatpush.msra.mxu0 0.0
    %1055 = vmatpush.msra.mxu0 0.0
    %1056 = vmatpush.msra.mxu0 0.0
    %1057 = vmatpush.msra.mxu0 0.0
    %1058 = vmatpush.msra.mxu0 0.0
    %1059 = vmatpush.msra.mxu0 0.0
    %1060 = vmatpush.msra.mxu0 %v1045
    %1061 = vmatpush.msra.mxu0 %v1044
    %1062 = vmatpush.msra.mxu0 %v1043
    %1063 = vmatpush.msra.mxu0 %v1042
    %1064 = vmatmul.f32.gmra.mxu0 %v985
    %v1065 = vpop.f32.mrf.mxu0
    %v1066 = vadd.f32 %v1047, %v1065
    %1067 = vmatmul.f32.gmra.mxu0 %v988
    %v1068 = vpop.f32.mrf.mxu0
    %v1069 = vadd.f32 %v1047, %v1068
    %1070 = vdwg.mxu0
    %1073 = vrot.lane.b32.xlu0 %v1008, 120
    %v1074 = vpop.permute.xlu0 %1073
    %1075 = vrot.lane.b32.xlu0 %v1011, 120
    %v1076 = vpop.permute.xlu0 %1075
    %1077 = vrot.lane.b32.xlu0 %v1008, 112
    %v1078 = vpop.permute.xlu0 %1077
    %1079 = vrot.lane.b32.xlu0 %v1011, 112
    %v1080 = vpop.permute.xlu0 %1079
    %1081 = vrot.lane.b32.xlu0 %v1008, 104
    %v1082 = vpop.permute.xlu0 %1081
    %1083 = vrot.lane.b32.xlu0 %v1011, 104
    %v1084 = vpop.permute.xlu0 %1083
    %1087 = vrot.lane.b32.xlu0 %v1037, 120
    %v1088 = vpop.permute.xlu0 %1087
    %1089 = vrot.lane.b32.xlu0 %v1040, 120
    %v1090 = vpop.permute.xlu0 %1089
    %1091 = vrot.lane.b32.xlu0 %v1037, 112
    %v1092 = vpop.permute.xlu0 %1091
    %1093 = vrot.lane.b32.xlu0 %v1040, 112
    %v1094 = vpop.permute.xlu0 %1093
    %1095 = vrot.lane.b32.xlu0 %v1037, 104
    %v1096 = vpop.permute.xlu0 %1095
    %1097 = vrot.lane.b32.xlu0 %v1040, 104
    %v1098 = vpop.permute.xlu0 %1097
    %1101 = vrot.lane.b32.xlu0 %v1066, 120
    %v1102 = vpop.permute.xlu0 %1101
    %1103 = vrot.lane.b32.xlu0 %v1069, 120
    %v1104 = vpop.permute.xlu0 %1103
    %1107 = vrot.lane.b32.xlu0 %v1066, 112
    %v1108 = vpop.permute.xlu0 %1107
    %1109 = vrot.lane.b32.xlu0 %v1069, 112
    %v1110 = vpop.permute.xlu0 %1109
    %1113 = vrot.lane.b32.xlu0 %v1066, 104
    %v1114 = vpop.permute.xlu0 %1113
    %1115 = vrot.lane.b32.xlu0 %v1069, 104
    %v1116 = vpop.permute.xlu0 %1115
    %v1119 = vsel %vm238, %v1008, 0
    %v1121 = vsel %vm238, %v1037, 0
    %1123 = vmatpush.xpose.msra.mxu0 0.0
    %1124 = vmatpush.xpose.msra.mxu0 0.0
    %1125 = vmatpush.xpose.msra.mxu0 0.0
    %1126 = vmatpush.xpose.msra.mxu0 0.0
    %1127 = vmatpush.xpose.msra.mxu0 0.0
    %1128 = vmatpush.xpose.msra.mxu0 0.0
    %1129 = vmatpush.xpose.msra.mxu0 0.0
    %1130 = vmatpush.xpose.msra.mxu0 0.0
    %1131 = vmatpush.xpose.msra.mxu0 0.0
    %1132 = vmatpush.xpose.msra.mxu0 0.0
    %1133 = vmatpush.xpose.msra.mxu0 0.0
    %1134 = vmatpush.xpose.msra.mxu0 0.0
    %1135 = vmatpush.xpose.msra.mxu0 0.0
    %1136 = vmatpush.xpose.msra.mxu0 0.0
    %1137 = vmatpush.xpose.msra.mxu0 0.0
    %1138 = vmatpush.xpose.msra.mxu0 %v1121
    %1139 = vmatmul.f32.gmra.mxu0 %v1119
    %v1140 = vpop.f32.mrf.mxu0
    %v1141 = vadd.f32 %v80, %v1140
    %1142 = vdwg.mxu0
    %v1143 = vsel %vm238, %v1011, 0
    %v1145 = vsel %vm238, %v1040, 0
    %1147 = vmatpush.xpose.msra.mxu0 0.0
    %1148 = vmatpush.xpose.msra.mxu0 0.0
    %1149 = vmatpush.xpose.msra.mxu0 0.0
    %1150 = vmatpush.xpose.msra.mxu0 0.0
    %1151 = vmatpush.xpose.msra.mxu0 0.0
    %1152 = vmatpush.xpose.msra.mxu0 0.0
    %1153 = vmatpush.xpose.msra.mxu0 0.0
    %1154 = vmatpush.xpose.msra.mxu0 0.0
    %1155 = vmatpush.xpose.msra.mxu0 0.0
    %1156 = vmatpush.xpose.msra.mxu0 0.0
    %1157 = vmatpush.xpose.msra.mxu0 0.0
    %1158 = vmatpush.xpose.msra.mxu0 0.0
    %1159 = vmatpush.xpose.msra.mxu0 0.0
    %1160 = vmatpush.xpose.msra.mxu0 0.0
    %1161 = vmatpush.xpose.msra.mxu0 0.0
    %1162 = vmatpush.xpose.msra.mxu0 %v1145
    %1163 = vmatmul.f32.gmra.mxu0 %v1143
    %v1164 = vpop.f32.mrf.mxu0
    %v1165 = vadd.f32 %v81, %v1164
    %1166 = vdwg.mxu0
    %v1167 = vsel %vm238, %v1074, 0
    %v1169 = vsel %vm238, %v1088, 0
    %1171 = vmatpush.xpose.msra.mxu0 0.0
    %1172 = vmatpush.xpose.msra.mxu0 0.0
    %1173 = vmatpush.xpose.msra.mxu0 0.0
    %1174 = vmatpush.xpose.msra.mxu0 0.0
    %1175 = vmatpush.xpose.msra.mxu0 0.0
    %1176 = vmatpush.xpose.msra.mxu0 0.0
    %1177 = vmatpush.xpose.msra.mxu0 0.0
    %1178 = vmatpush.xpose.msra.mxu0 0.0
    %1179 = vmatpush.xpose.msra.mxu0 0.0
    %1180 = vmatpush.xpose.msra.mxu0 0.0
    %1181 = vmatpush.xpose.msra.mxu0 0.0
    %1182 = vmatpush.xpose.msra.mxu0 0.0
    %1183 = vmatpush.xpose.msra.mxu0 0.0
    %1184 = vmatpush.xpose.msra.mxu0 0.0
    %1185 = vmatpush.xpose.msra.mxu0 0.0
    %1186 = vmatpush.xpose.msra.mxu0 %v1169
    %1187 = vmatmul.f32.gmra.mxu0 %v1167
    %v1188 = vpop.f32.mrf.mxu0
    %v1189 = vadd.f32 %v82, %v1188
    %1190 = vdwg.mxu0
    %v1191 = vsel %vm238, %v1076, 0
    %v1193 = vsel %vm238, %v1090, 0
    %1195 = vmatpush.xpose.msra.mxu0 0.0
    %1196 = vmatpush.xpose.msra.mxu0 0.0
    %1197 = vmatpush.xpose.msra.mxu0 0.0
    %1198 = vmatpush.xpose.msra.mxu0 0.0
    %1199 = vmatpush.xpose.msra.mxu0 0.0
    %1200 = vmatpush.xpose.msra.mxu0 0.0
    %1201 = vmatpush.xpose.msra.mxu0 0.0
    %1202 = vmatpush.xpose.msra.mxu0 0.0
    %1203 = vmatpush.xpose.msra.mxu0 0.0
    %1204 = vmatpush.xpose.msra.mxu0 0.0
    %1205 = vmatpush.xpose.msra.mxu0 0.0
    %1206 = vmatpush.xpose.msra.mxu0 0.0
    %1207 = vmatpush.xpose.msra.mxu0 0.0
    %1208 = vmatpush.xpose.msra.mxu0 0.0
    %1209 = vmatpush.xpose.msra.mxu0 0.0
    %1210 = vmatpush.xpose.msra.mxu0 %v1193
    %1211 = vmatmul.f32.gmra.mxu0 %v1191
    %v1212 = vpop.f32.mrf.mxu0
    %v1213 = vadd.f32 %v83, %v1212
    %1214 = vdwg.mxu0
    %v1215 = vsel %vm238, %v1078, 0
    %v1217 = vsel %vm238, %v1092, 0
    %1219 = vmatpush.xpose.msra.mxu0 0.0
    %1220 = vmatpush.xpose.msra.mxu0 0.0
    %1221 = vmatpush.xpose.msra.mxu0 0.0
    %1222 = vmatpush.xpose.msra.mxu0 0.0
    %1223 = vmatpush.xpose.msra.mxu0 0.0
    %1224 = vmatpush.xpose.msra.mxu0 0.0
    %1225 = vmatpush.xpose.msra.mxu0 0.0
    %1226 = vmatpush.xpose.msra.mxu0 0.0
    %1227 = vmatpush.xpose.msra.mxu0 0.0
    %1228 = vmatpush.xpose.msra.mxu0 0.0
    %1229 = vmatpush.xpose.msra.mxu0 0.0
    %1230 = vmatpush.xpose.msra.mxu0 0.0
    %1231 = vmatpush.xpose.msra.mxu0 0.0
    %1232 = vmatpush.xpose.msra.mxu0 0.0
    %1233 = vmatpush.xpose.msra.mxu0 0.0
    %1234 = vmatpush.xpose.msra.mxu0 %v1217
    %1235 = vmatmul.f32.gmra.mxu0 %v1215
    %v1236 = vpop.f32.mrf.mxu0
    %v1237 = vadd.f32 %v84, %v1236
    %1238 = vdwg.mxu0
    %v1239 = vsel %vm238, %v1080, 0
    %v1241 = vsel %vm238, %v1094, 0
    %1243 = vmatpush.xpose.msra.mxu0 0.0
    %1244 = vmatpush.xpose.msra.mxu0 0.0
    %1245 = vmatpush.xpose.msra.mxu0 0.0
    %1246 = vmatpush.xpose.msra.mxu0 0.0
    %1247 = vmatpush.xpose.msra.mxu0 0.0
    %1248 = vmatpush.xpose.msra.mxu0 0.0
    %1249 = vmatpush.xpose.msra.mxu0 0.0
    %1250 = vmatpush.xpose.msra.mxu0 0.0
    %1251 = vmatpush.xpose.msra.mxu0 0.0
    %1252 = vmatpush.xpose.msra.mxu0 0.0
    %1253 = vmatpush.xpose.msra.mxu0 0.0
    %1254 = vmatpush.xpose.msra.mxu0 0.0
    %1255 = vmatpush.xpose.msra.mxu0 0.0
    %1256 = vmatpush.xpose.msra.mxu0 0.0
    %1257 = vmatpush.xpose.msra.mxu0 0.0
    %1258 = vmatpush.xpose.msra.mxu0 %v1241
    %1259 = vmatmul.f32.gmra.mxu0 %v1239
    %v1260 = vpop.f32.mrf.mxu0
    %v1261 = vadd.f32 %v85, %v1260
    %1262 = vdwg.mxu0
    %v1263 = vsel %vm238, %v1082, 0
    %v1265 = vsel %vm238, %v1096, 0
    %1267 = vmatpush.xpose.msra.mxu0 0.0
    %1268 = vmatpush.xpose.msra.mxu0 0.0
    %1269 = vmatpush.xpose.msra.mxu0 0.0
    %1270 = vmatpush.xpose.msra.mxu0 0.0
    %1271 = vmatpush.xpose.msra.mxu0 0.0
    %1272 = vmatpush.xpose.msra.mxu0 0.0
    %1273 = vmatpush.xpose.msra.mxu0 0.0
    %1274 = vmatpush.xpose.msra.mxu0 0.0
    %1275 = vmatpush.xpose.msra.mxu0 0.0
    %1276 = vmatpush.xpose.msra.mxu0 0.0
    %1277 = vmatpush.xpose.msra.mxu0 0.0
    %1278 = vmatpush.xpose.msra.mxu0 0.0
    %1279 = vmatpush.xpose.msra.mxu0 0.0
    %1280 = vmatpush.xpose.msra.mxu0 0.0
    %1281 = vmatpush.xpose.msra.mxu0 0.0
    %1282 = vmatpush.xpose.msra.mxu0 %v1265
    %1283 = vmatmul.f32.gmra.mxu0 %v1263
    %v1284 = vpop.f32.mrf.mxu0
    %v1285 = vadd.f32 %v86, %v1284
    %1286 = vdwg.mxu0
    %v1287 = vsel %vm238, %v1084, 0
    %v1289 = vsel %vm238, %v1098, 0
    %1291 = vmatpush.xpose.msra.mxu0 0.0
    %1292 = vmatpush.xpose.msra.mxu0 0.0
    %1293 = vmatpush.xpose.msra.mxu0 0.0
    %1294 = vmatpush.xpose.msra.mxu0 0.0
    %1295 = vmatpush.xpose.msra.mxu0 0.0
    %1296 = vmatpush.xpose.msra.mxu0 0.0
    %1297 = vmatpush.xpose.msra.mxu0 0.0
    %1298 = vmatpush.xpose.msra.mxu0 0.0
    %1299 = vmatpush.xpose.msra.mxu0 0.0
    %1300 = vmatpush.xpose.msra.mxu0 0.0
    %1301 = vmatpush.xpose.msra.mxu0 0.0
    %1302 = vmatpush.xpose.msra.mxu0 0.0
    %1303 = vmatpush.xpose.msra.mxu0 0.0
    %1304 = vmatpush.xpose.msra.mxu0 0.0
    %1305 = vmatpush.xpose.msra.mxu0 0.0
    %1306 = vmatpush.xpose.msra.mxu0 %v1289
    %1307 = vmatmul.f32.gmra.mxu0 %v1287
    %v1308 = vpop.f32.mrf.mxu0
    %v1309 = vadd.f32 %v87, %v1308
    %1310 = vdwg.mxu0
    %v1311 = vsel %vm238, %v1141, -inf
    %1312 = vmax.xlane.f32.xlu0 %v1311
    %v1313 = vpop.xlane.xlu0 %1312
    %v1314 = vsel %vm238, %v1165, -inf
    %1315 = vmax.xlane.f32.xlu0 %v1314
    %v1316 = vpop.xlane.xlu0 %1315
    %v1317 = vsel %vm238, %v1189, -inf
    %1318 = vmax.xlane.f32.xlu0 %v1317
    %v1319 = vpop.xlane.xlu0 %1318
    %v1320 = vsel %vm238, %v1213, -inf
    %1321 = vmax.xlane.f32.xlu0 %v1320
    %v1322 = vpop.xlane.xlu0 %1321
    %v1323 = vsel %vm238, %v1237, -inf
    %1324 = vmax.xlane.f32.xlu0 %v1323
    %v1325 = vpop.xlane.xlu0 %1324
    %v1326 = vsel %vm238, %v1261, -inf
    %1327 = vmax.xlane.f32.xlu0 %v1326
    %v1328 = vpop.xlane.xlu0 %1327
    %v1329 = vsel %vm238, %v1285, -inf
    %1330 = vmax.xlane.f32.xlu0 %v1329
    %v1331 = vpop.xlane.xlu0 %1330
    %v1332 = vsel %vm238, %v1309, -inf
    %1333 = vmax.xlane.f32.xlu0 %v1332
    %v1334 = vpop.xlane.xlu0 %1333
    %v1335 = vsub.f32 %v1141, %v1313
    %v1336 = vsub.f32 %v1165, %v1316
    %v1337 = vsub.f32 %v1189, %v1319
    %v1338 = vsub.f32 %v1213, %v1322
    %v1339 = vsub.f32 %v1237, %v1325
    %v1340 = vsub.f32 %v1261, %v1328
    %v1341 = vsub.f32 %v1285, %v1331
    %v1342 = vsub.f32 %v1309, %v1334
    %v1343 = vmul.f32 %v1335, 1.442695
    %v1344 = vpow.pop %v1343
    %v1345 = vmul.f32 %v1336, 1.442695
    %v1346 = vpow.pop %v1345
    %v1347 = vmul.f32 %v1337, 1.442695
    %v1348 = vpow.pop %v1347
    %v1349 = vmul.f32 %v1338, 1.442695
    %v1350 = vpow.pop %v1349
    %v1351 = vmul.f32 %v1339, 1.442695
    %v1352 = vpow.pop %v1351
    %v1353 = vmul.f32 %v1340, 1.442695
    %v1354 = vpow.pop %v1353
    %v1355 = vmul.f32 %v1341, 1.442695
    %v1356 = vpow.pop %v1355
    %v1357 = vmul.f32 %v1342, 1.442695
    %v1358 = vpow.pop %v1357
    %v1359 = vsel %vm238, %v1344, 0.0
    %1360 = vadd.xlane.f32.xlu0 %v1359
    %v1361 = vpop.xlane.xlu0 %1360
    %v1362 = vsel %vm238, %v1346, 0.0
    %1363 = vadd.xlane.f32.xlu0 %v1362
    %v1364 = vpop.xlane.xlu0 %1363
    %v1365 = vsel %vm238, %v1348, 0.0
    %1366 = vadd.xlane.f32.xlu0 %v1365
    %v1367 = vpop.xlane.xlu0 %1366
    %v1368 = vsel %vm238, %v1350, 0.0
    %1369 = vadd.xlane.f32.xlu0 %v1368
    %v1370 = vpop.xlane.xlu0 %1369
    %v1371 = vsel %vm238, %v1352, 0.0
    %1372 = vadd.xlane.f32.xlu0 %v1371
    %v1373 = vpop.xlane.xlu0 %1372
    %v1374 = vsel %vm238, %v1354, 0.0
    %1375 = vadd.xlane.f32.xlu0 %v1374
    %v1376 = vpop.xlane.xlu0 %1375
    %v1377 = vsel %vm238, %v1356, 0.0
    %1378 = vadd.xlane.f32.xlu0 %v1377
    %v1379 = vpop.xlane.xlu0 %1378
    %v1380 = vsel %vm238, %v1358, 0.0
    %1381 = vadd.xlane.f32.xlu0 %v1380
    %v1382 = vpop.xlane.xlu0 %1381
    %v1383 = vrcp.pop %v1361
    %v1384 = vrcp.pop %v1364
    %v1385 = vrcp.pop %v1367
    %v1386 = vrcp.pop %v1370
    %v1387 = vrcp.pop %v1373
    %v1388 = vrcp.pop %v1376
    %v1389 = vrcp.pop %v1379
    %v1390 = vrcp.pop %v1382
    %v1391 = vmul.f32 %v1344, %v1383
    %v1392 = vmul.f32 %v1346, %v1384
    %v1393 = vmul.f32 %v1348, %v1385
    %v1394 = vmul.f32 %v1350, %v1386
    %v1395 = vmul.f32 %v1352, %v1387
    %v1396 = vmul.f32 %v1354, %v1388
    %v1397 = vmul.f32 %v1356, %v1389
    %v1398 = vmul.f32 %v1358, %v1390
    %v1400 = vsel %vm238, %v1391, 0
    %1402 = vmatpush.msra.mxu0 0.0
    %1403 = vmatpush.msra.mxu0 0.0
    %1404 = vmatpush.msra.mxu0 0.0
    %1405 = vmatpush.msra.mxu0 0.0
    %1406 = vmatpush.msra.mxu0 0.0
    %1407 = vmatpush.msra.mxu0 0.0
    %1408 = vmatpush.msra.mxu0 0.0
    %1409 = vmatpush.msra.mxu0 0.0
    %1410 = vmatpush.msra.mxu0 0.0
    %1411 = vmatpush.msra.mxu0 0.0
    %1412 = vmatpush.msra.mxu0 0.0
    %1413 = vmatpush.msra.mxu0 0.0
    %1414 = vmatpush.msra.mxu0 0.0
    %1415 = vmatpush.msra.mxu0 0.0
    %1416 = vmatpush.msra.mxu0 0.0
    %1417 = vmatpush.msra.mxu0 %v1066
    %1418 = vmatmul.f32.gmra.mxu0 %v1400
    %v1419 = vpop.f32.mrf.mxu0
    %v1420 = vadd.f32 0.0, %v1419
    %1421 = vdwg.mxu0
    %v1423 = vsel %vm238, %v1392, 0
    %1425 = vmatpush.msra.mxu0 0.0
    %1426 = vmatpush.msra.mxu0 0.0
    %1427 = vmatpush.msra.mxu0 0.0
    %1428 = vmatpush.msra.mxu0 0.0
    %1429 = vmatpush.msra.mxu0 0.0
    %1430 = vmatpush.msra.mxu0 0.0
    %1431 = vmatpush.msra.mxu0 0.0
    %1432 = vmatpush.msra.mxu0 0.0
    %1433 = vmatpush.msra.mxu0 0.0
    %1434 = vmatpush.msra.mxu0 0.0
    %1435 = vmatpush.msra.mxu0 0.0
    %1436 = vmatpush.msra.mxu0 0.0
    %1437 = vmatpush.msra.mxu0 0.0
    %1438 = vmatpush.msra.mxu0 0.0
    %1439 = vmatpush.msra.mxu0 0.0
    %1440 = vmatpush.msra.mxu0 %v1069
    %1441 = vmatmul.f32.gmra.mxu0 %v1423
    %v1442 = vpop.f32.mrf.mxu0
    %v1443 = vadd.f32 0.0, %v1442
    %1444 = vdwg.mxu0
    %v1446 = vsel %vm238, %v1393, 0
    %1448 = vmatpush.msra.mxu0 0.0
    %1449 = vmatpush.msra.mxu0 0.0
    %1450 = vmatpush.msra.mxu0 0.0
    %1451 = vmatpush.msra.mxu0 0.0
    %1452 = vmatpush.msra.mxu0 0.0
    %1453 = vmatpush.msra.mxu0 0.0
    %1454 = vmatpush.msra.mxu0 0.0
    %1455 = vmatpush.msra.mxu0 0.0
    %1456 = vmatpush.msra.mxu0 0.0
    %1457 = vmatpush.msra.mxu0 0.0
    %1458 = vmatpush.msra.mxu0 0.0
    %1459 = vmatpush.msra.mxu0 0.0
    %1460 = vmatpush.msra.mxu0 0.0
    %1461 = vmatpush.msra.mxu0 0.0
    %1462 = vmatpush.msra.mxu0 0.0
    %1463 = vmatpush.msra.mxu0 %v1102
    %1464 = vmatmul.f32.gmra.mxu0 %v1446
    %v1465 = vpop.f32.mrf.mxu0
    %v1466 = vadd.f32 0.0, %v1465
    %1467 = vdwg.mxu0
    %v1469 = vsel %vm238, %v1394, 0
    %1471 = vmatpush.msra.mxu0 0.0
    %1472 = vmatpush.msra.mxu0 0.0
    %1473 = vmatpush.msra.mxu0 0.0
    %1474 = vmatpush.msra.mxu0 0.0
    %1475 = vmatpush.msra.mxu0 0.0
    %1476 = vmatpush.msra.mxu0 0.0
    %1477 = vmatpush.msra.mxu0 0.0
    %1478 = vmatpush.msra.mxu0 0.0
    %1479 = vmatpush.msra.mxu0 0.0
    %1480 = vmatpush.msra.mxu0 0.0
    %1481 = vmatpush.msra.mxu0 0.0
    %1482 = vmatpush.msra.mxu0 0.0
    %1483 = vmatpush.msra.mxu0 0.0
    %1484 = vmatpush.msra.mxu0 0.0
    %1485 = vmatpush.msra.mxu0 0.0
    %1486 = vmatpush.msra.mxu0 %v1104
    %1487 = vmatmul.f32.gmra.mxu0 %v1469
    %v1488 = vpop.f32.mrf.mxu0
    %v1489 = vadd.f32 0.0, %v1488
    %1490 = vdwg.mxu0
    %v1492 = vsel %vm238, %v1395, 0
    %1494 = vmatpush.msra.mxu0 0.0
    %1495 = vmatpush.msra.mxu0 0.0
    %1496 = vmatpush.msra.mxu0 0.0
    %1497 = vmatpush.msra.mxu0 0.0
    %1498 = vmatpush.msra.mxu0 0.0
    %1499 = vmatpush.msra.mxu0 0.0
    %1500 = vmatpush.msra.mxu0 0.0
    %1501 = vmatpush.msra.mxu0 0.0
    %1502 = vmatpush.msra.mxu0 0.0
    %1503 = vmatpush.msra.mxu0 0.0
    %1504 = vmatpush.msra.mxu0 0.0
    %1505 = vmatpush.msra.mxu0 0.0
    %1506 = vmatpush.msra.mxu0 0.0
    %1507 = vmatpush.msra.mxu0 0.0
    %1508 = vmatpush.msra.mxu0 0.0
    %1509 = vmatpush.msra.mxu0 %v1108
    %1510 = vmatmul.f32.gmra.mxu0 %v1492
    %v1511 = vpop.f32.mrf.mxu0
    %v1512 = vadd.f32 0.0, %v1511
    %1513 = vdwg.mxu0
    %v1515 = vsel %vm238, %v1396, 0
    %1517 = vmatpush.msra.mxu0 0.0
    %1518 = vmatpush.msra.mxu0 0.0
    %1519 = vmatpush.msra.mxu0 0.0
    %1520 = vmatpush.msra.mxu0 0.0
    %1521 = vmatpush.msra.mxu0 0.0
    %1522 = vmatpush.msra.mxu0 0.0
    %1523 = vmatpush.msra.mxu0 0.0
    %1524 = vmatpush.msra.mxu0 0.0
    %1525 = vmatpush.msra.mxu0 0.0
    %1526 = vmatpush.msra.mxu0 0.0
    %1527 = vmatpush.msra.mxu0 0.0
    %1528 = vmatpush.msra.mxu0 0.0
    %1529 = vmatpush.msra.mxu0 0.0
    %1530 = vmatpush.msra.mxu0 0.0
    %1531 = vmatpush.msra.mxu0 0.0
    %1532 = vmatpush.msra.mxu0 %v1110
    %1533 = vmatmul.f32.gmra.mxu0 %v1515
    %v1534 = vpop.f32.mrf.mxu0
    %v1535 = vadd.f32 0.0, %v1534
    %1536 = vdwg.mxu0
    %v1538 = vsel %vm238, %v1397, 0
    %1540 = vmatpush.msra.mxu0 0.0
    %1541 = vmatpush.msra.mxu0 0.0
    %1542 = vmatpush.msra.mxu0 0.0
    %1543 = vmatpush.msra.mxu0 0.0
    %1544 = vmatpush.msra.mxu0 0.0
    %1545 = vmatpush.msra.mxu0 0.0
    %1546 = vmatpush.msra.mxu0 0.0
    %1547 = vmatpush.msra.mxu0 0.0
    %1548 = vmatpush.msra.mxu0 0.0
    %1549 = vmatpush.msra.mxu0 0.0
    %1550 = vmatpush.msra.mxu0 0.0
    %1551 = vmatpush.msra.mxu0 0.0
    %1552 = vmatpush.msra.mxu0 0.0
    %1553 = vmatpush.msra.mxu0 0.0
    %1554 = vmatpush.msra.mxu0 0.0
    %1555 = vmatpush.msra.mxu0 %v1114
    %1556 = vmatmul.f32.gmra.mxu0 %v1538
    %v1557 = vpop.f32.mrf.mxu0
    %v1558 = vadd.f32 0.0, %v1557
    %1559 = vdwg.mxu0
    %v1561 = vsel %vm238, %v1398, 0
    %1563 = vmatpush.msra.mxu0 0.0
    %1564 = vmatpush.msra.mxu0 0.0
    %1565 = vmatpush.msra.mxu0 0.0
    %1566 = vmatpush.msra.mxu0 0.0
    %1567 = vmatpush.msra.mxu0 0.0
    %1568 = vmatpush.msra.mxu0 0.0
    %1569 = vmatpush.msra.mxu0 0.0
    %1570 = vmatpush.msra.mxu0 0.0
    %1571 = vmatpush.msra.mxu0 0.0
    %1572 = vmatpush.msra.mxu0 0.0
    %1573 = vmatpush.msra.mxu0 0.0
    %1574 = vmatpush.msra.mxu0 0.0
    %1575 = vmatpush.msra.mxu0 0.0
    %1576 = vmatpush.msra.mxu0 0.0
    %1577 = vmatpush.msra.mxu0 0.0
    %1578 = vmatpush.msra.mxu0 %v1116
    %1579 = vmatmul.f32.gmra.mxu0 %v1561
    %v1580 = vpop.f32.mrf.mxu0
    %v1581 = vadd.f32 0.0, %v1580
    %1582 = vdwg.mxu0
    %1585 = vrot.lane.b32.xlu0 %v1466, 8
    %v1586 = vpop.permute.xlu0 %1585
    %1587 = vrot.lane.b32.xlu0 %v1489, 8
    %v1588 = vpop.permute.xlu0 %1587
    %1593 = vrot.lane.b32.xlu0 %v1512, 16
    %v1594 = vpop.permute.xlu0 %1593
    %1595 = vrot.lane.b32.xlu0 %v1535, 16
    %v1596 = vpop.permute.xlu0 %1595
    %1601 = vrot.lane.b32.xlu0 %v1558, 24
    %v1602 = vpop.permute.xlu0 %1601
    %1603 = vrot.lane.b32.xlu0 %v1581, 24
    %v1604 = vpop.permute.xlu0 %1603
    %v1607 = vsel %vm238, %v1420, %v1586
    %v1608 = vsel %vm238, %v1443, %v1588
    %v1609 = vsel %vm729, %v1607, %v1594
    %v1610 = vsel %vm729, %v1608, %v1596
    %v1611 = vsel %vm732, %v1609, %v1602
    %v1612 = vsel %vm732, %v1610, %v1604
    %v1613 = vld [vmem:[#allocation7 + $0x150] sm:$0xff]
    %v1614 = vld [vmem:[#allocation7 + $0x158] sm:$0xff]
    %v1615 = vld [vmem:[#allocation7 + $0x160] sm:$0xff]
    %v1616 = vld [vmem:[#allocation7 + $0x168] sm:$0xff]
    %v1617 = vld [vmem:[#allocation7 + $0x1d3] sm:$0x1]
    %v1618 = vperm.slane %v1617, 0
    %v1620 = vsel %vm102, %v1611, 0
    %v1623 = vsel %vm102, %v1612, 0
    %1625 = vmatpush.msra.mxu0 0.0
    %1626 = vmatpush.msra.mxu0 0.0
    %1627 = vmatpush.msra.mxu0 0.0
    %1628 = vmatpush.msra.mxu0 0.0
    %1629 = vmatpush.msra.mxu0 0.0
    %1630 = vmatpush.msra.mxu0 0.0
    %1631 = vmatpush.msra.mxu0 0.0
    %1632 = vmatpush.msra.mxu0 0.0
    %1633 = vmatpush.msra.mxu0 0.0
    %1634 = vmatpush.msra.mxu0 0.0
    %1635 = vmatpush.msra.mxu0 0.0
    %1636 = vmatpush.msra.mxu0 0.0
    %1637 = vmatpush.msra.mxu0 %v1616
    %1638 = vmatpush.msra.mxu0 %v1615
    %1639 = vmatpush.msra.mxu0 %v1614
    %1640 = vmatpush.msra.mxu0 %v1613
    %1641 = vmatmul.f32.gmra.mxu0 %v1620
    %v1642 = vpop.f32.mrf.mxu0
    %v1643 = vadd.f32 %v1618, %v1642
    %1644 = vmatmul.f32.gmra.mxu0 %v1623
    %v1645 = vpop.f32.mrf.mxu0
    %v1646 = vadd.f32 %v1618, %v1645
    %1647 = vdwg.mxu0
    %v1648 = vadd.f32 %v976, %v1643
    %v1649 = vadd.f32 %v977, %v1646
    %v1650 = vld [vmem:[#allocation7 + $0x1d4] sm:$0x1]
    %v1651 = vld [vmem:[#allocation7 + $0x1d5] sm:$0x1]
    %v1652 = vsel %vm102, %v1648, 0.0
    %1653 = vadd.xlane.f32.xlu0 %v1652
    %v1654 = vpop.xlane.xlu0 %1653
    %v1655 = vsel %vm102, %v1649, 0.0
    %1656 = vadd.xlane.f32.xlu0 %v1655
    %v1657 = vpop.xlane.xlu0 %1656
    %v1658 = vmul.f32 %v1654, %v786
    %v1659 = vmul.f32 %v1657, %v786
    %v1660 = vsub.f32 %v1648, %v1658
    %v1661 = vsub.f32 %v1649, %v1659
    %v1662 = vmul.f32 %v1660, %v1660
    %v1663 = vmul.f32 %v1661, %v1661
    %v1664 = vsel %vm102, %v1662, 0.0
    %1665 = vadd.xlane.f32.xlu0 %v1664
    %v1666 = vpop.xlane.xlu0 %1665
    %v1667 = vsel %vm102, %v1663, 0.0
    %1668 = vadd.xlane.f32.xlu0 %v1667
    %v1669 = vpop.xlane.xlu0 %1668
    %v1670 = vmul.f32 %v1666, %v786
    %v1671 = vmul.f32 %v1669, %v786
    %v1672 = vadd.f32 %v1670, 1e-12
    %v1673 = vadd.f32 %v1671, 1e-12
    %v1674 = vrsqrt.pop %v1672
    %v1675 = vmul.f32 %v1674, %v1672
    %v1676 = vmul.f32 %v1675, %v1674
    %v1677 = vmul.f32 0.5, %v1676
    %v1678 = vsub.f32 1.5, %v1677
    %v1679 = vmul.f32 %v1674, %v1678
    %vm1680 = vweird.f32 %v1672
    %vm1681 = vweird.f32 %v1674
    %vm1682 = vmor %vm1680, %vm1681
    %v1683 = vsel %vm1682, %v1674, %v1679
    %v1684 = vrsqrt.pop %v1673
    %v1685 = vmul.f32 %v1684, %v1673
    %v1686 = vmul.f32 %v1685, %v1684
    %v1687 = vmul.f32 0.5, %v1686
    %v1688 = vsub.f32 1.5, %v1687
    %v1689 = vmul.f32 %v1684, %v1688
    %vm1690 = vweird.f32 %v1673
    %vm1691 = vweird.f32 %v1684
    %vm1692 = vmor %vm1690, %vm1691
    %v1693 = vsel %vm1692, %v1684, %v1689
    %v1694 = vmul.f32 %v1660, %v1683
    %v1695 = vmul.f32 %v1661, %v1693
    %v1696 = vperm.slane %v1650, 0
    %v1697 = vmul.f32 %v1694, %v1696
    %v1698 = vmul.f32 %v1695, %v1696
    %v1699 = vperm.slane %v1651, 0
    %v1700 = vadd.f32 %v1697, %v1699
    %v1701 = vadd.f32 %v1698, %v1699
    %v1702 = vld [vmem:[#allocation7 + $0x170] sm:$0xff]
    %v1703 = vld [vmem:[#allocation7 + $0x178] sm:$0xff]
    %v1704 = vld [vmem:[#allocation7 + $0x180] sm:$0xff]
    %v1705 = vld [vmem:[#allocation7 + $0x188] sm:$0xff]
    %v1706 = vld [vmem:[#allocation7 + $0x1d6] sm:$0x1]
    %v1707 = vperm.slane %v1706, 0
    %v1709 = vsel %vm102, %v1700, 0
    %v1712 = vsel %vm102, %v1701, 0
    %1714 = vmatpush.msra.mxu0 0.0
    %1715 = vmatpush.msra.mxu0 0.0
    %1716 = vmatpush.msra.mxu0 0.0
    %1717 = vmatpush.msra.mxu0 0.0
    %1718 = vmatpush.msra.mxu0 0.0
    %1719 = vmatpush.msra.mxu0 0.0
    %1720 = vmatpush.msra.mxu0 0.0
    %1721 = vmatpush.msra.mxu0 0.0
    %1722 = vmatpush.msra.mxu0 0.0
    %1723 = vmatpush.msra.mxu0 0.0
    %1724 = vmatpush.msra.mxu0 0.0
    %1725 = vmatpush.msra.mxu0 0.0
    %1726 = vmatpush.msra.mxu0 %v1705
    %1727 = vmatpush.msra.mxu0 %v1704
    %1728 = vmatpush.msra.mxu0 %v1703
    %1729 = vmatpush.msra.mxu0 %v1702
    %1730 = vmatmul.f32.gmra.mxu0 %v1709
    %v1731 = vpop.f32.mrf.mxu0
    %v1732 = vadd.f32 %v1707, %v1731
    %1733 = vmatmul.f32.gmra.mxu0 %v1712
    %v1734 = vpop.f32.mrf.mxu0
    %v1735 = vadd.f32 %v1707, %v1734
    %1736 = vdwg.mxu0
    %v1737 = vmul.f32 %v1732, 0.5
    %v1738 = vmul.f32 %v1735, 0.5
    %v1739 = vmul.f32 %v1732, 0.044715
    %v1740 = vmul.f32 %v1735, 0.044715
    %v1741 = vmul.f32 %v1739, %v1732
    %v1742 = vmul.f32 %v1740, %v1735
    %v1743 = vmul.f32 %v1741, %v1732
    %v1744 = vmul.f32 %v1742, %v1735
    %v1745 = vadd.f32 %v1732, %v1743
    %v1746 = vadd.f32 %v1735, %v1744
    %v1747 = vmul.f32 %v1745, 0.7978846
    %v1748 = vmul.f32 %v1746, 0.7978846
    %v1749 = vtanh.pop %v1747
    %v1750 = vtanh.pop %v1748
    %v1751 = vadd.f32 %v1749, 1.0
    %v1752 = vadd.f32 %v1750, 1.0
    %v1753 = vmul.f32 %v1737, %v1751
    %v1754 = vmul.f32 %v1738, %v1752
    %v1755 = vld [vmem:[#allocation7 + $0x190] sm:$0xff]
    %v1756 = vld [vmem:[#allocation7 + $0x198] sm:$0xff]
    %v1757 = vld [vmem:[#allocation7 + $0x1a0] sm:$0xff]
    %v1758 = vld [vmem:[#allocation7 + $0x1a8] sm:$0xff]
    %v1759 = vld [vmem:[#allocation7 + $0x1b0] sm:$0xff]
    %v1760 = vld [vmem:[#allocation7 + $0x1b8] sm:$0xff]
    %v1761 = vld [vmem:[#allocation7 + $0x1c0] sm:$0xff]
    %v1762 = vld [vmem:[#allocation7 + $0x1c8] sm:$0xff]
    %v1763 = vld [vmem:[#allocation7 + $0x1d7] sm:$0x1]
    %v1764 = vperm.slane %v1763, 0
    %v1766 = vsel %vm894, %v1753, 0
    %v1769 = vsel %vm894, %v1754, 0
    %1771 = vmatpush.msra.mxu0 0.0
    %1772 = vmatpush.msra.mxu0 0.0
    %1773 = vmatpush.msra.mxu0 0.0
    %1774 = vmatpush.msra.mxu0 0.0
    %1775 = vmatpush.msra.mxu0 0.0
    %1776 = vmatpush.msra.mxu0 0.0
    %1777 = vmatpush.msra.mxu0 0.0
    %1778 = vmatpush.msra.mxu0 0.0
    %1779 = vmatpush.msra.mxu0 %v1762
    %1780 = vmatpush.msra.mxu0 %v1761
    %1781 = vmatpush.msra.mxu0 %v1760
    %1782 = vmatpush.msra.mxu0 %v1759
    %1783 = vmatpush.msra.mxu0 %v1758
    %1784 = vmatpush.msra.mxu0 %v1757
    %1785 = vmatpush.msra.mxu0 %v1756
    %1786 = vmatpush.msra.mxu0 %v1755
    %1787 = vmatmul.f32.gmra.mxu0 %v1766
    %v1788 = vpop.f32.mrf.mxu0
    %v1789 = vadd.f32 %v1764, %v1788
    %1790 = vmatmul.f32.gmra.mxu0 %v1769
    %v1791 = vpop.f32.mrf.mxu0
    %v1792 = vadd.f32 %v1764, %v1791
    %1793 = vdwg.mxu0
    %v1794 = vadd.f32 %v1700, %v1789
    %v1795 = vadd.f32 %v1701, %v1792
    %v1796 = vld [vmem:[#allocation7 + $0x1d8] sm:$0x1]
    %v1797 = vld [vmem:[#allocation7 + $0x1d9] sm:$0x1]
    %v1798 = vsel %vm102, %v1794, 0.0
    %1799 = vadd.xlane.f32.xlu0 %v1798
    %v1800 = vpop.xlane.xlu0 %1799
    %v1801 = vsel %vm102, %v1795, 0.0
    %1802 = vadd.xlane.f32.xlu0 %v1801
    %v1803 = vpop.xlane.xlu0 %1802
    %v1804 = vmul.f32 %v1800, %v786
    %v1805 = vmul.f32 %v1803, %v786
    %v1806 = vsub.f32 %v1794, %v1804
    %v1807 = vsub.f32 %v1795, %v1805
    %v1808 = vmul.f32 %v1806, %v1806
    %v1809 = vmul.f32 %v1807, %v1807
    %v1810 = vsel %vm102, %v1808, 0.0
    %1811 = vadd.xlane.f32.xlu0 %v1810
    %v1812 = vpop.xlane.xlu0 %1811
    %v1813 = vsel %vm102, %v1809, 0.0
    %1814 = vadd.xlane.f32.xlu0 %v1813
    %v1815 = vpop.xlane.xlu0 %1814
    %v1816 = vmul.f32 %v1812, %v786
    %v1817 = vmul.f32 %v1815, %v786
    %v1818 = vadd.f32 %v1816, 1e-12
    %v1819 = vadd.f32 %v1817, 1e-12
    %v1820 = vrsqrt.pop %v1818
    %v1821 = vmul.f32 %v1820, %v1818
    %v1822 = vmul.f32 %v1821, %v1820
    %v1823 = vmul.f32 0.5, %v1822
    %v1824 = vsub.f32 1.5, %v1823
    %v1825 = vmul.f32 %v1820, %v1824
    %vm1826 = vweird.f32 %v1818
    %vm1827 = vweird.f32 %v1820
    %vm1828 = vmor %vm1826, %vm1827
    %v1829 = vsel %vm1828, %v1820, %v1825
    %v1830 = vrsqrt.pop %v1819
    %v1831 = vmul.f32 %v1830, %v1819
    %v1832 = vmul.f32 %v1831, %v1830
    %v1833 = vmul.f32 0.5, %v1832
    %v1834 = vsub.f32 1.5, %v1833
    %v1835 = vmul.f32 %v1830, %v1834
    %vm1836 = vweird.f32 %v1819
    %vm1837 = vweird.f32 %v1830
    %vm1838 = vmor %vm1836, %vm1837
    %v1839 = vsel %vm1838, %v1830, %v1835
    %v1840 = vmul.f32 %v1806, %v1829
    %v1841 = vmul.f32 %v1807, %v1839
    %v1842 = vperm.slane %v1796, 0
    %v1843 = vmul.f32 %v1840, %v1842
    %v1844 = vmul.f32 %v1841, %v1842
    %v1845 = vperm.slane %v1797, 0
    %v1846 = vadd.f32 %v1843, %v1845
    %v1847 = vadd.f32 %v1844, %v1845
    %v1850 = vrot.slane %v1847, 7
    %vm1851 = vcmask 1041409
    %v1852 = vsel %vm1851, %v1850, %v1846
    %vm1854 = vcmask 1041408
    %v1855 = vsel %vm1854, %v1852, 0.0
    %v1856 = vld [vmem:[#allocation7 + $0x1e0] sm:$0xff]
    %v1857 = vld [vmem:[#allocation7 + $0x1e8] sm:$0xff]
    %v1858 = vld [vmem:[#allocation7 + $0x1f0] sm:$0xff]
    %v1859 = vld [vmem:[#allocation7 + $0x1f8] sm:$0xff]
    %v1860 = vld [vmem:[#allocation7 + $0x200] sm:$0x1]
    %v1861 = vperm.slane %v1860, 0
    %v1863 = vsel %vm102, %v1855, 0
    %1865 = vmatpush.msra.mxu0 0.0
    %1866 = vmatpush.msra.mxu0 0.0
    %1867 = vmatpush.msra.mxu0 0.0
    %1868 = vmatpush.msra.mxu0 0.0
    %1869 = vmatpush.msra.mxu0 0.0
    %1870 = vmatpush.msra.mxu0 0.0
    %1871 = vmatpush.msra.mxu0 0.0
    %1872 = vmatpush.msra.mxu0 0.0
    %1873 = vmatpush.msra.mxu0 0.0
    %1874 = vmatpush.msra.mxu0 0.0
    %1875 = vmatpush.msra.mxu0 0.0
    %1876 = vmatpush.msra.mxu0 0.0
    %1877 = vmatpush.msra.mxu0 %v1859
    %1878 = vmatpush.msra.mxu0 %v1858
    %1879 = vmatpush.msra.mxu0 %v1857
    %1880 = vmatpush.msra.mxu0 %v1856
    %1881 = vmatmul.f32.gmra.mxu0 %v1863
    %v1882 = vpop.f32.mrf.mxu0
    %v1883 = vadd.f32 %v1861, %v1882
    %1884 = vdwg.mxu0
    %1885 = vst [vmem:[#allocation8] sm:$0xff] %v1883
    // Predicated region
    $region26: #{tpu_custom_call.1} parent=1 // pred_check
      _
    $region27: #{tpu_custom_call.1} parent=1 // pred_check_branch
      %1887 = sbr.rel (0) target = $region29
    $region28: #{tpu_custom_call.1} parent=1 // pred_region
      %1889 = vsyncadd [#allocation4], 0
      %s1891 = sshll.u32 [#allocation8], 4
      %s1892 = int_to_ptr.vmem [resolvable:$true] %s1891
      %s1893 = sshll.u32 %s3, 4
      %s1894 = int_to_ptr.hbm [resolvable:$true] %s1893
      %1896 = dma.vmem_to_hbm [thread:$0]  %s1892, 128, %s1894, [#allocation4]
    $region29: #{tpu_custom_call.1} parent=1 // pred_fallthru
      _
    // Predicated region
    $region30: #{tpu_custom_call.1} parent=1 // pred_check
      _
    $region31: #{tpu_custom_call.1} parent=1 // pred_check_branch
      %1898 = sbr.rel (0) target = $region33
    $region32: #{tpu_custom_call.1} parent=1 // pred_region
      %1900 = dma.done [#allocation4], 128
    $region33: #{tpu_custom_call.1} parent=1 // pred_fallthru
      _
    %1901 = vsyncpa [#allocation3], 1
    %1902 = vsyncpa [#allocation6], 1
    %1903 = vsyncpa [#allocation4], 1

</llo_original>
